<compile_context>
chip_gen: v7x
topology: tpu7x:2x2x1
jax: 0.10.0
libtpu: 0.0.40
codegen_flags: <defaults>
</compile_context>

<pallas_src>
import functools

import jax
import jax.numpy as jnp
from jax import lax
from jax.experimental import pallas as pl
from jax.experimental.pallas import tpu as pltpu

LN_EPS = 1e-5
_VMEM_BLOCK_BYTES = 4 * 1024 * 1024   # target bytes for one (double-buffered) input block
_MAX_TOKENS_PER_STEP = 2048           # row-tile cap (perf-review MAX_TM bump)


def _choose_rh(batch, hp, wp, p, c_in, itemsize):
    """Patch rows per grid step: the largest divisor of hp whose input block
    fits the VMEM budget and token cap, keeping >= 2 total grid steps when
    possible so both v7x TensorCores stay busy."""
    best = 1
    for rh in range(1, hp + 1):
        if hp % rh:
            continue
        if rh * p * wp * p * c_in * itemsize > _VMEM_BLOCK_BYTES:
            continue
        if rh * wp > _MAX_TOKENS_PER_STEP:
            continue
        if rh > 1 and batch * (hp // rh) < 2:
            continue
        best = rh
    return best


def _flexi_embed_kernel(x_ref, w_ref, v_ref, o_ref, *, p, rh):
    """One grid step = rh patch rows of one image.

    x_ref: (1, rh*p, Wp, p*C) f32  raw NHWC rows (patch extraction fused: the
                                   (kw, c) part of a token is contiguous)
    w_ref: (p, p*C, D)        bf16 conv weight split along kh
    v_ref: (8, D)             f32  rows [bias, g1, b1, g2, b2, 0, 0, 0]
    o_ref: (1, rh, Wp, D)          tokens (bf16 by default)
    """
    wp_ = x_ref.shape[2]
    d = w_ref.shape[2]
    bias = v_ref[0:1, :]
    g1, b1 = v_ref[1:2, :], v_ref[2:3, :]
    g2, b2 = v_ref[3:4, :], v_ref[4:5, :]
    inv_d = 1.0 / float(d)

    def layernorm(v, g, b):
        mu = jnp.sum(v, axis=-1, keepdims=True) * inv_d
        vc = v - mu
        var = jnp.sum(vc * vc, axis=-1, keepdims=True) * inv_d
        return vc * lax.rsqrt(var + LN_EPS) * g + b

    @pl.loop(0, rh)
    def _(rr):
        # Accumulate the patch conv over the p rows of each patch: p small
        # (Wp, p*C) @ (p*C, D) matmuls -> no activation transpose ever.
        acc = jnp.zeros((wp_, d), jnp.float32)
        for kh in range(p):                                   # p is small/static
            xk = x_ref[0, rr * p + kh].astype(jnp.bfloat16)   # (Wp, p*C)
            acc = acc + jnp.dot(xk, w_ref[kh],
                                preferred_element_type=jnp.float32)
        y = acc + bias
        y = layernorm(y, g1, b1)        # FlexiPatchEmbed LayerNorm
        y = layernorm(y, g2, b2)        # all_patch_norm LayerNorm
        o_ref[0, rr] = y.astype(o_ref.dtype)


def flexi_patch_embed(x_nhwc, w3, vecs, patch_size, embed_dim,
                      out_dtype=jnp.bfloat16):
    """x_nhwc: (B, H, W, C) activations (C may include fused-away channels as
    zero weight rows); w3: (p, p*C, D) bf16; vecs: (8, D) f32.
    Returns (B, Hp*Wp, D) tokens in out_dtype."""
    b, h, w, c = x_nhwc.shape
    p = patch_size
    assert h % p == 0 and w % p == 0, (h, w, p)
    hp, wp = h // p, w // p
    assert w3.shape == (p, p * c, embed_dim), (w3.shape, (p, p * c, embed_dim))

    # Free (contiguous) reshape: no XLA transpose / token-matrix pass.
    x2 = x_nhwc.reshape(b, h, wp, p * c)
    rh = _choose_rh(b, hp, wp, p, c, jnp.dtype(x_nhwc.dtype).itemsize)

    n_tok = b * hp * wp
    cost = pl.CostEstimate(
        flops=2 * n_tok * (p * p * c) * embed_dim,
        transcendentals=2 * n_tok,
        bytes_accessed=(x2.size * jnp.dtype(x2.dtype).itemsize
                        + w3.size * 2 + vecs.size * 4
                        + n_tok * embed_dim * jnp.dtype(out_dtype).itemsize))

    kernel = functools.partial(_flexi_embed_kernel, p=p, rh=rh)
    out = pl.pallas_call(
        kernel,
        out_shape=jax.ShapeDtypeStruct((b, hp, wp, embed_dim), out_dtype),
        grid=(b, hp // rh),
        in_specs=[
            pl.BlockSpec((1, rh * p, wp, p * c), lambda bi, ri: (bi, ri, 0, 0)),
            pl.BlockSpec((p, p * c, embed_dim), lambda bi, ri: (0, 0, 0)),
            pl.BlockSpec((8, embed_dim), lambda bi, ri: (0, 0)),
        ],
        out_specs=pl.BlockSpec((1, rh, wp, embed_dim),
                               lambda bi, ri: (bi, ri, 0, 0)),
        compiler_params=pltpu.CompilerParams(
            dimension_semantics=("parallel", "parallel"),
            vmem_limit_bytes=32 * 1024 * 1024),
        cost_estimate=cost,
    )(x2, w3, vecs)
    # Contiguous merge of (Hp, Wp) -> free metadata reshape.
    return out.reshape(b, hp * wp, embed_dim)


def make_params(key, embed_dim, patch_size, in_chans_list):
    """Raw f32 parameters mirroring the torch module (non-trivial LN init so
    the test is meaningful).  Conv weights are stored in (kh, kw, c) flattening
    order, i.e. torch (D, C, p, p).transpose(2, 3, 1, 0).reshape(K, D)."""
    params = {}
    p = patch_size
    for name, cin in in_chans_list:
        key, kw, kb, kg1, kb1 = jax.random.split(key, 5)
        fan_in = cin * p * p
        params[name] = dict(
            w=jax.random.normal(kw, (fan_in, embed_dim), jnp.float32)
              * (1.0 / jnp.sqrt(fan_in)),
            b=jax.random.normal(kb, (embed_dim,), jnp.float32) * 0.02,
            g1=1.0 + 0.1 * jax.random.normal(kg1, (embed_dim,), jnp.float32),
            b1=0.05 * jax.random.normal(kb1, (embed_dim,), jnp.float32),
        )
    key, kg2, kb2 = jax.random.split(key, 3)
    params["all_patch_norm"] = dict(
        g2=1.0 + 0.1 * jax.random.normal(kg2, (embed_dim,), jnp.float32),
        b2=0.05 * jax.random.normal(kb2, (embed_dim,), jnp.float32),
    )
    return params


def prepare_kernel_params(params, patch_size):
    """One-time conversion to kernel-ready layout:
      * weight reshaped to (p, p*C_eff, D) bf16, split along kh;
      * vehicle weight expanded to C_eff = 22 interleaved channels with zero
        rows for the dropped temporal slice (fuses ogm[..., 0] into the dot);
      * one packed (8, D) f32 block [b, g1, b1, g2, b2] per modality."""
    p = patch_size
    g2 = params["all_patch_norm"]["g2"]
    b2 = params["all_patch_norm"]["b2"]
    prepared = {}
    for name, c_in, c_eff in (("vehicle", 11, 22), ("map", 3, 3), ("flow", 2, 2)):
        pe = params[name]
        d = pe["w"].shape[1]
        w4 = pe["w"].reshape(p, p, c_in, d)                    # (kh, kw, c, d)
        if c_eff != c_in:                                      # interleave zeros
            w5 = jnp.zeros((p, p, c_in, 2, d), pe["w"].dtype)  # for t == 1
            w5 = w5.at[:, :, :, 0, :].set(w4)
            w4 = w5.reshape(p, p, c_eff, d)
        w3 = w4.reshape(p, p * c_eff, d).astype(jnp.bfloat16)
        vecs = jnp.zeros((8, d), jnp.float32)
        for r, v in enumerate((pe["b"], pe["g1"], pe["b1"], g2, b2)):
            vecs = vecs.at[r, :].set(v)
        prepared[name] = dict(w=w3, vecs=vecs)
    return prepared


def flexi_input_patcher(kernel_params, ogm, map_img, flow, patch_size,
                        embed_dim, out_dtype=jnp.bfloat16):
    """JAX/Pallas equivalent of FlexiInputPatcher.forward (eval path)."""
    b, h, w, c, t = ogm.shape
    # Free view of ogm as 22 interleaved channels; the t=1 weight rows are
    # zero, so no XLA channel-select pass is needed.
    ogm22 = ogm.reshape(b, h, w, c * t)

    def run(name, x):
        kp = kernel_params[name]
        return flexi_patch_embed(x, kp["w"], kp["vecs"], patch_size,
                                 embed_dim, out_dtype)

    return run("vehicle", ogm22), run("map", map_img), run("flow", flow)


# ---------------- pure-JAX reference (sanity check) ----------------
def _ref_patch_embed(x_nhwc, w_raw, b, g1, b1, g2, b2, p, embed_dim):
    bsz, h, w, c = x_nhwc.shape
    hp, wp = h // p, w // p
    patches = (x_nhwc.reshape(bsz, hp, p, wp, p, c)
               .transpose(0, 1, 3, 2, 4, 5)
               .reshape(bsz, hp * wp, p * p * c))
    # Same bf16 rounding of the matmul operands as the kernel.
    patches = patches.astype(jnp.bfloat16).astype(jnp.float32)
    wm = w_raw.astype(jnp.bfloat16).astype(jnp.float32)
    y = patches @ wm + b

    def ln(v, g, beta):
        mu = v.mean(-1, keepdims=True)
        var = ((v - mu) ** 2).mean(-1, keepdims=True)
        return (v - mu) / jnp.sqrt(var + LN_EPS) * g + beta

    return ln(ln(y, g1, b1), g2, b2)


if __name__ == "__main__":
    B = 2
    H = W = 16
    EMBED_DIM = 32
    PATCH = 4

    key = jax.random.PRNGKey(0)
    k_ogm, k_map, k_flow, k_par = jax.random.split(key, 4)

    ogm = jax.random.normal(k_ogm, (B, H, W, 11, 2), jnp.float32)
    map_img = jax.random.normal(k_map, (B, H // 2, W // 2, 3), jnp.float32)
    flow = jax.random.normal(k_flow, (B, H, W, 2), jnp.float32)

    raw_params = make_params(k_par, EMBED_DIM, PATCH,
                             [("vehicle", 11), ("map", 3), ("flow", 2)])
    kernel_params = prepare_kernel_params(raw_params, PATCH)

    fwd = jax.jit(functools.partial(flexi_input_patcher, patch_size=PATCH,
                                    embed_dim=EMBED_DIM))
    ogm_tok, map_tok, flow_tok = fwd(kernel_params, ogm, map_img, flow)
    jax.block_until_ready((ogm_tok, map_tok, flow_tok))

    # Sanity check against a pure-JAX reference.  The kernel's deliberate
    # precision changes are bf16 matmul operands (mirrored in the reference)
    # and a bf16 output cast (covered by the tolerance).
    g2 = raw_params["all_patch_norm"]["g2"]
    b2 = raw_params["all_patch_norm"]["b2"]
    expected_n = {"vehicle": (H // PATCH) * (W // PATCH),
                  "map": (H // 2 // PATCH) * (W // 2 // PATCH),
                  "flow": (H // PATCH) * (W // PATCH)}
    for (name, x), out in zip(
            (("vehicle", ogm[..., 0]), ("map", map_img), ("flow", flow)),
            (ogm_tok, map_tok, flow_tok)):
        pe = raw_params[name]
        ref = _ref_patch_embed(x, pe["w"], pe["b"], pe["g1"], pe["b1"],
                               g2, b2, PATCH, EMBED_DIM)
        assert out.shape == (B, expected_n[name], EMBED_DIM), (name, out.shape)
        assert out.dtype == jnp.bfloat16, (name, out.dtype)
        err = float(jnp.max(jnp.abs(out.astype(jnp.float32) - ref)))
        assert err < 3e-2, (name, err)

    print("KERNEL_OK")
</pallas_src>

<mosaic_0001>
module attributes {stable_mosaic.version = 11 : i64} {
  func.func @_flexi_embed_kernel(%arg0: i32, %arg1: i32, %arg2: memref<1x16x4x88xf32, #tpu.memory_space<vmem>>, %arg3: memref<4x88x32xbf16, #tpu.memory_space<vmem>>, %arg4: memref<8x32xf32, #tpu.memory_space<vmem>>, %arg5: memref<1x4x4x32xbf16, #tpu.memory_space<vmem>>) attributes {dimension_semantics = [#tpu.dimension_semantics<parallel>, #tpu.dimension_semantics<parallel>], iteration_bounds = array<i64: 2, 1>, scalar_prefetch = 0 : i64, scratch_operands = 0 : i64, tpu.core_type = #tpu.core_type<tc>, window_params = [{transform_indices = @transform_0, window_bounds = array<i64: 1, 16, 4, 88>}, {pipeline_mode = #tpu.pipeline_mode<synchronous>, transform_indices = @transform_1, window_bounds = array<i64: 4, 88, 32>}, {pipeline_mode = #tpu.pipeline_mode<synchronous>, transform_indices = @transform_2, window_bounds = array<i64: 8, 32>}, {transform_indices = @transform_3, window_bounds = array<i64: 1, 4, 4, 32>}]} {
    %c0 = arith.constant 0 : index
    %c0_0 = arith.constant 0 : index
    %0 = vector.load %arg4[%c0, %c0_0] : memref<8x32xf32, #tpu.memory_space<vmem>>, vector<1x32xf32>
    %c1 = arith.constant 1 : index
    %c0_1 = arith.constant 0 : index
    %1 = vector.load %arg4[%c1, %c0_1] : memref<8x32xf32, #tpu.memory_space<vmem>>, vector<1x32xf32>
    %c2 = arith.constant 2 : index
    %c0_2 = arith.constant 0 : index
    %2 = vector.load %arg4[%c2, %c0_2] : memref<8x32xf32, #tpu.memory_space<vmem>>, vector<1x32xf32>
    %c3 = arith.constant 3 : index
    %c0_3 = arith.constant 0 : index
    %3 = vector.load %arg4[%c3, %c0_3] : memref<8x32xf32, #tpu.memory_space<vmem>>, vector<1x32xf32>
    %c4 = arith.constant 4 : index
    %c0_4 = arith.constant 0 : index
    %4 = vector.load %arg4[%c4, %c0_4] : memref<8x32xf32, #tpu.memory_space<vmem>>, vector<1x32xf32>
    %c0_i32 = arith.constant 0 : i32
    %c4_i32 = arith.constant 4 : i32
    %5 = arith.addi %c0_i32, %c4_i32 : i32
    %c1_i32 = arith.constant 1 : i32
    scf.for %arg6 = %c0_i32 to %5 step %c1_i32  : i32 {
      %c1_i32_6 = arith.constant 1 : i32
      %6 = arith.muli %arg6, %c1_i32_6 : i32
      %c0_i32_7 = arith.constant 0 : i32
      %7 = arith.addi %c0_i32_7, %6 : i32
      %cst = arith.constant 0.000000e+00 : f32
      %8 = vector.broadcast %cst : f32 to vector<4x32xf32>
      %c4_i32_8 = arith.constant 4 : i32
      %9 = arith.muli %7, %c4_i32_8 : i32
      %c0_i32_9 = arith.constant 0 : i32
      %10 = arith.addi %9, %c0_i32_9 : i32
      %c0_10 = arith.constant 0 : index
      %11 = arith.index_cast %10 : i32 to index
      %c0_11 = arith.constant 0 : index
      %c0_12 = arith.constant 0 : index
      %12 = vector.load %arg2[%c0_10, %11, %c0_11, %c0_12] : memref<1x16x4x88xf32, #tpu.memory_space<vmem>>, vector<1x1x4x88xf32>
      %13 = vector.shape_cast %12 : vector<1x1x4x88xf32> to vector<4x88xf32>
      %14 = arith.truncf %13 : vector<4x88xf32> to vector<4x88xbf16>
      %c0_13 = arith.constant 0 : index
      %c0_14 = arith.constant 0 : index
      %c0_15 = arith.constant 0 : index
      %15 = vector.load %arg3[%c0_13, %c0_14, %c0_15] : memref<4x88x32xbf16, #tpu.memory_space<vmem>>, vector<1x88x32xbf16>
      %16 = vector.shape_cast %15 : vector<1x88x32xbf16> to vector<88x32xbf16>
      %cst_16 = arith.constant dense<0.000000e+00> : vector<4x32xf32>
      %17 = tpu.matmul %14, %16, %cst_16 {dimension_numbers = #tpu.dot_dimension_numbers<[1], [0], [0], [1], [0, 0, 1, 1], [], []>} : vector<4x88xbf16>, vector<88x32xbf16>, vector<4x32xf32> -> vector<4x32xf32>
      %18 = arith.addf %8, %17 : vector<4x32xf32>
      %c4_i32_17 = arith.constant 4 : i32
      %19 = arith.muli %7, %c4_i32_17 : i32
      %c1_i32_18 = arith.constant 1 : i32
      %20 = arith.addi %19, %c1_i32_18 : i32
      %c0_19 = arith.constant 0 : index
      %21 = arith.index_cast %20 : i32 to index
      %c0_20 = arith.constant 0 : index
      %c0_21 = arith.constant 0 : index
      %22 = vector.load %arg2[%c0_19, %21, %c0_20, %c0_21] : memref<1x16x4x88xf32, #tpu.memory_space<vmem>>, vector<1x1x4x88xf32>
      %23 = vector.shape_cast %22 : vector<1x1x4x88xf32> to vector<4x88xf32>
      %24 = arith.truncf %23 : vector<4x88xf32> to vector<4x88xbf16>
      %c1_22 = arith.constant 1 : index
      %c0_23 = arith.constant 0 : index
      %c0_24 = arith.constant 0 : index
      %25 = vector.load %arg3[%c1_22, %c0_23, %c0_24] : memref<4x88x32xbf16, #tpu.memory_space<vmem>>, vector<1x88x32xbf16>
      %26 = vector.shape_cast %25 : vector<1x88x32xbf16> to vector<88x32xbf16>
      %cst_25 = arith.constant dense<0.000000e+00> : vector<4x32xf32>
      %27 = tpu.matmul %24, %26, %cst_25 {dimension_numbers = #tpu.dot_dimension_numbers<[1], [0], [0], [1], [0, 0, 1, 1], [], []>} : vector<4x88xbf16>, vector<88x32xbf16>, vector<4x32xf32> -> vector<4x32xf32>
      %28 = arith.addf %18, %27 : vector<4x32xf32>
      %c4_i32_26 = arith.constant 4 : i32
      %29 = arith.muli %7, %c4_i32_26 : i32
      %c2_i32 = arith.constant 2 : i32
      %30 = arith.addi %29, %c2_i32 : i32
      %c0_27 = arith.constant 0 : index
      %31 = arith.index_cast %30 : i32 to index
      %c0_28 = arith.constant 0 : index
      %c0_29 = arith.constant 0 : index
      %32 = vector.load %arg2[%c0_27, %31, %c0_28, %c0_29] : memref<1x16x4x88xf32, #tpu.memory_space<vmem>>, vector<1x1x4x88xf32>
      %33 = vector.shape_cast %32 : vector<1x1x4x88xf32> to vector<4x88xf32>
      %34 = arith.truncf %33 : vector<4x88xf32> to vector<4x88xbf16>
      %c2_30 = arith.constant 2 : index
      %c0_31 = arith.constant 0 : index
      %c0_32 = arith.constant 0 : index
      %35 = vector.load %arg3[%c2_30, %c0_31, %c0_32] : memref<4x88x32xbf16, #tpu.memory_space<vmem>>, vector<1x88x32xbf16>
      %36 = vector.shape_cast %35 : vector<1x88x32xbf16> to vector<88x32xbf16>
      %cst_33 = arith.constant dense<0.000000e+00> : vector<4x32xf32>
      %37 = tpu.matmul %34, %36, %cst_33 {dimension_numbers = #tpu.dot_dimension_numbers<[1], [0], [0], [1], [0, 0, 1, 1], [], []>} : vector<4x88xbf16>, vector<88x32xbf16>, vector<4x32xf32> -> vector<4x32xf32>
      %38 = arith.addf %28, %37 : vector<4x32xf32>
      %c4_i32_34 = arith.constant 4 : i32
      %39 = arith.muli %7, %c4_i32_34 : i32
      %c3_i32 = arith.constant 3 : i32
      %40 = arith.addi %39, %c3_i32 : i32
      %c0_35 = arith.constant 0 : index
      %41 = arith.index_cast %40 : i32 to index
      %c0_36 = arith.constant 0 : index
      %c0_37 = arith.constant 0 : index
      %42 = vector.load %arg2[%c0_35, %41, %c0_36, %c0_37] : memref<1x16x4x88xf32, #tpu.memory_space<vmem>>, vector<1x1x4x88xf32>
      %43 = vector.shape_cast %42 : vector<1x1x4x88xf32> to vector<4x88xf32>
      %44 = arith.truncf %43 : vector<4x88xf32> to vector<4x88xbf16>
      %c3_38 = arith.constant 3 : index
      %c0_39 = arith.constant 0 : index
      %c0_40 = arith.constant 0 : index
      %45 = vector.load %arg3[%c3_38, %c0_39, %c0_40] : memref<4x88x32xbf16, #tpu.memory_space<vmem>>, vector<1x88x32xbf16>
      %46 = vector.shape_cast %45 : vector<1x88x32xbf16> to vector<88x32xbf16>
      %cst_41 = arith.constant dense<0.000000e+00> : vector<4x32xf32>
      %47 = tpu.matmul %44, %46, %cst_41 {dimension_numbers = #tpu.dot_dimension_numbers<[1], [0], [0], [1], [0, 0, 1, 1], [], []>} : vector<4x88xbf16>, vector<88x32xbf16>, vector<4x32xf32> -> vector<4x32xf32>
      %48 = arith.addf %38, %47 : vector<4x32xf32>
      %49 = vector.broadcast %0 : vector<1x32xf32> to vector<4x32xf32>
      %50 = arith.addf %48, %49 : vector<4x32xf32>
      %cst_42 = arith.constant dense<0.000000e+00> : vector<4xf32>
      %51 = vector.multi_reduction <add>, %50, %cst_42 [1] : vector<4x32xf32> to vector<4xf32>
      %52 = vector.shape_cast %51 : vector<4xf32> to vector<4x1xf32>
      %cst_43 = arith.constant 3.125000e-02 : f32
      %53 = vector.broadcast %cst_43 : f32 to vector<4x1xf32>
      %54 = arith.mulf %52, %53 : vector<4x1xf32>
      %55 = vector.broadcast %54 : vector<4x1xf32> to vector<4x32xf32>
      %56 = arith.subf %50, %55 : vector<4x32xf32>
      %57 = arith.mulf %56, %56 : vector<4x32xf32>
      %cst_44 = arith.constant dense<0.000000e+00> : vector<4xf32>
      %58 = vector.multi_reduction <add>, %57, %cst_44 [1] : vector<4x32xf32> to vector<4xf32>
      %59 = vector.shape_cast %58 : vector<4xf32> to vector<4x1xf32>
      %cst_45 = arith.constant 3.125000e-02 : f32
      %60 = vector.broadcast %cst_45 : f32 to vector<4x1xf32>
      %61 = arith.mulf %59, %60 : vector<4x1xf32>
      %cst_46 = arith.constant 9.99999974E-6 : f32
      %62 = vector.broadcast %cst_46 : f32 to vector<4x1xf32>
      %63 = arith.addf %61, %62 : vector<4x1xf32>
      %64 = math.rsqrt %63 : vector<4x1xf32>
      %65 = vector.broadcast %64 : vector<4x1xf32> to vector<4x32xf32>
      %66 = arith.mulf %56, %65 : vector<4x32xf32>
      %67 = vector.broadcast %1 : vector<1x32xf32> to vector<4x32xf32>
      %68 = arith.mulf %66, %67 : vector<4x32xf32>
      %69 = vector.broadcast %2 : vector<1x32xf32> to vector<4x32xf32>
      %70 = arith.addf %68, %69 : vector<4x32xf32>
      %cst_47 = arith.constant dense<0.000000e+00> : vector<4xf32>
      %71 = vector.multi_reduction <add>, %70, %cst_47 [1] : vector<4x32xf32> to vector<4xf32>
      %72 = vector.shape_cast %71 : vector<4xf32> to vector<4x1xf32>
      %cst_48 = arith.constant 3.125000e-02 : f32
      %73 = vector.broadcast %cst_48 : f32 to vector<4x1xf32>
      %74 = arith.mulf %72, %73 : vector<4x1xf32>
      %75 = vector.broadcast %74 : vector<4x1xf32> to vector<4x32xf32>
      %76 = arith.subf %70, %75 : vector<4x32xf32>
      %77 = arith.mulf %76, %76 : vector<4x32xf32>
      %cst_49 = arith.constant dense<0.000000e+00> : vector<4xf32>
      %78 = vector.multi_reduction <add>, %77, %cst_49 [1] : vector<4x32xf32> to vector<4xf32>
      %79 = vector.shape_cast %78 : vector<4xf32> to vector<4x1xf32>
      %cst_50 = arith.constant 3.125000e-02 : f32
      %80 = vector.broadcast %cst_50 : f32 to vector<4x1xf32>
      %81 = arith.mulf %79, %80 : vector<4x1xf32>
      %cst_51 = arith.constant 9.99999974E-6 : f32
      %82 = vector.broadcast %cst_51 : f32 to vector<4x1xf32>
      %83 = arith.addf %81, %82 : vector<4x1xf32>
      %84 = math.rsqrt %83 : vector<4x1xf32>
      %85 = vector.broadcast %84 : vector<4x1xf32> to vector<4x32xf32>
      %86 = arith.mulf %76, %85 : vector<4x32xf32>
      %87 = vector.broadcast %3 : vector<1x32xf32> to vector<4x32xf32>
      %88 = arith.mulf %86, %87 : vector<4x32xf32>
      %89 = vector.broadcast %4 : vector<1x32xf32> to vector<4x32xf32>
      %90 = arith.addf %88, %89 : vector<4x32xf32>
      %91 = arith.truncf %90 : vector<4x32xf32> to vector<4x32xbf16>
      %c0_52 = arith.constant 0 : index
      %92 = arith.index_cast %7 : i32 to index
      %c0_53 = arith.constant 0 : index
      %c0_54 = arith.constant 0 : index
      %93 = vector.load %arg5[%c0_52, %92, %c0_53, %c0_54] : memref<1x4x4x32xbf16, #tpu.memory_space<vmem>>, vector<1x1x4x32xbf16>
      %94 = vector.shape_cast %93 : vector<1x1x4x32xbf16> to vector<4x32xbf16>
      %95 = vector.shape_cast %91 : vector<4x32xbf16> to vector<1x1x4x32xbf16>
      tpu.vector_store %arg5[%c0_52, %92, %c0_53, %c0_54], %95 {strides = array<i32>} : memref<1x4x4x32xbf16, #tpu.memory_space<vmem>>, vector<1x1x4x32xbf16>,
    }
    %c4_i32_5 = arith.constant 4 : i32
    return
  }
  func.func @transform_0(%arg0: i32, %arg1: i32) -> (i32, i32, i32, i32) {
    %c0_i32 = arith.constant 0 : i32
    %c0_i32_0 = arith.constant 0 : i32
    %c0_i32_1 = arith.constant 0 : i32
    return %arg0, %arg1, %c0_i32, %c0_i32_0 : i32, i32, i32, i32
  }
  func.func @transform_1(%arg0: i32, %arg1: i32) -> (i32, i32, i32) {
    %c0_i32 = arith.constant 0 : i32
    %c0_i32_0 = arith.constant 0 : i32
    %c0_i32_1 = arith.constant 0 : i32
    %c0_i32_2 = arith.constant 0 : i32
    return %c0_i32, %c0_i32_0, %c0_i32_1 : i32, i32, i32
  }
  func.func @transform_2(%arg0: i32, %arg1: i32) -> (i32, i32) {
    %c0_i32 = arith.constant 0 : i32
    %c0_i32_0 = arith.constant 0 : i32
    %c0_i32_1 = arith.constant 0 : i32
    return %c0_i32, %c0_i32_0 : i32, i32
  }
  func.func @transform_3(%arg0: i32, %arg1: i32) -> (i32, i32, i32, i32) {
    %c0_i32 = arith.constant 0 : i32
    %c0_i32_0 = arith.constant 0 : i32
    %c0_i32_1 = arith.constant 0 : i32
    return %arg0, %arg1, %c0_i32, %c0_i32_0 : i32, i32, i32, i32
  }
}

module attributes {stable_mosaic.version = 11 : i64} {
  func.func @_flexi_embed_kernel(%arg0: i32, %arg1: i32, %arg2: memref<1x16x4x8xf32, #tpu.memory_space<vmem>>, %arg3: memref<4x8x32xbf16, #tpu.memory_space<vmem>>, %arg4: memref<8x32xf32, #tpu.memory_space<vmem>>, %arg5: memref<1x4x4x32xbf16, #tpu.memory_space<vmem>>) attributes {dimension_semantics = [#tpu.dimension_semantics<parallel>, #tpu.dimension_semantics<parallel>], iteration_bounds = array<i64: 2, 1>, scalar_prefetch = 0 : i64, scratch_operands = 0 : i64, tpu.core_type = #tpu.core_type<tc>, window_params = [{transform_indices = @transform_0, window_bounds = array<i64: 1, 16, 4, 8>}, {pipeline_mode = #tpu.pipeline_mode<synchronous>, transform_indices = @transform_1, window_bounds = array<i64: 4, 8, 32>}, {pipeline_mode = #tpu.pipeline_mode<synchronous>, transform_indices = @transform_2, window_bounds = array<i64: 8, 32>}, {transform_indices = @transform_3, window_bounds = array<i64: 1, 4, 4, 32>}]} {
    %c0 = arith.constant 0 : index
    %c0_0 = arith.constant 0 : index
    %0 = vector.load %arg4[%c0, %c0_0] : memref<8x32xf32, #tpu.memory_space<vmem>>, vector<1x32xf32>
    %c1 = arith.constant 1 : index
    %c0_1 = arith.constant 0 : index
    %1 = vector.load %arg4[%c1, %c0_1] : memref<8x32xf32, #tpu.memory_space<vmem>>, vector<1x32xf32>
    %c2 = arith.constant 2 : index
    %c0_2 = arith.constant 0 : index
    %2 = vector.load %arg4[%c2, %c0_2] : memref<8x32xf32, #tpu.memory_space<vmem>>, vector<1x32xf32>
    %c3 = arith.constant 3 : index
    %c0_3 = arith.constant 0 : index
    %3 = vector.load %arg4[%c3, %c0_3] : memref<8x32xf32, #tpu.memory_space<vmem>>, vector<1x32xf32>
    %c4 = arith.constant 4 : index
    %c0_4 = arith.constant 0 : index
    %4 = vector.load %arg4[%c4, %c0_4] : memref<8x32xf32, #tpu.memory_space<vmem>>, vector<1x32xf32>
    %c0_i32 = arith.constant 0 : i32
    %c4_i32 = arith.constant 4 : i32
    %5 = arith.addi %c0_i32, %c4_i32 : i32
    %c1_i32 = arith.constant 1 : i32
    scf.for %arg6 = %c0_i32 to %5 step %c1_i32  : i32 {
      %c1_i32_6 = arith.constant 1 : i32
      %6 = arith.muli %arg6, %c1_i32_6 : i32
      %c0_i32_7 = arith.constant 0 : i32
      %7 = arith.addi %c0_i32_7, %6 : i32
      %cst = arith.constant 0.000000e+00 : f32
      %8 = vector.broadcast %cst : f32 to vector<4x32xf32>
      %c4_i32_8 = arith.constant 4 : i32
      %9 = arith.muli %7, %c4_i32_8 : i32
      %c0_i32_9 = arith.constant 0 : i32
      %10 = arith.addi %9, %c0_i32_9 : i32
      %c0_10 = arith.constant 0 : index
      %11 = arith.index_cast %10 : i32 to index
      %c0_11 = arith.constant 0 : index
      %c0_12 = arith.constant 0 : index
      %12 = vector.load %arg2[%c0_10, %11, %c0_11, %c0_12] : memref<1x16x4x8xf32, #tpu.memory_space<vmem>>, vector<1x1x4x8xf32>
      %13 = vector.shape_cast %12 : vector<1x1x4x8xf32> to vector<4x8xf32>
      %14 = arith.truncf %13 : vector<4x8xf32> to vector<4x8xbf16>
      %c0_13 = arith.constant 0 : index
      %c0_14 = arith.constant 0 : index
      %c0_15 = arith.constant 0 : index
      %15 = vector.load %arg3[%c0_13, %c0_14, %c0_15] : memref<4x8x32xbf16, #tpu.memory_space<vmem>>, vector<1x8x32xbf16>
      %16 = vector.shape_cast %15 : vector<1x8x32xbf16> to vector<8x32xbf16>
      %cst_16 = arith.constant dense<0.000000e+00> : vector<4x32xf32>
      %17 = tpu.matmul %14, %16, %cst_16 {dimension_numbers = #tpu.dot_dimension_numbers<[1], [0], [0], [1], [0, 0, 1, 1], [], []>} : vector<4x8xbf16>, vector<8x32xbf16>, vector<4x32xf32> -> vector<4x32xf32>
      %18 = arith.addf %8, %17 : vector<4x32xf32>
      %c4_i32_17 = arith.constant 4 : i32
      %19 = arith.muli %7, %c4_i32_17 : i32
      %c1_i32_18 = arith.constant 1 : i32
      %20 = arith.addi %19, %c1_i32_18 : i32
      %c0_19 = arith.constant 0 : index
      %21 = arith.index_cast %20 : i32 to index
      %c0_20 = arith.constant 0 : index
      %c0_21 = arith.constant 0 : index
      %22 = vector.load %arg2[%c0_19, %21, %c0_20, %c0_21] : memref<1x16x4x8xf32, #tpu.memory_space<vmem>>, vector<1x1x4x8xf32>
      %23 = vector.shape_cast %22 : vector<1x1x4x8xf32> to vector<4x8xf32>
      %24 = arith.truncf %23 : vector<4x8xf32> to vector<4x8xbf16>
      %c1_22 = arith.constant 1 : index
      %c0_23 = arith.constant 0 : index
      %c0_24 = arith.constant 0 : index
      %25 = vector.load %arg3[%c1_22, %c0_23, %c0_24] : memref<4x8x32xbf16, #tpu.memory_space<vmem>>, vector<1x8x32xbf16>
      %26 = vector.shape_cast %25 : vector<1x8x32xbf16> to vector<8x32xbf16>
      %cst_25 = arith.constant dense<0.000000e+00> : vector<4x32xf32>
      %27 = tpu.matmul %24, %26, %cst_25 {dimension_numbers = #tpu.dot_dimension_numbers<[1], [0], [0], [1], [0, 0, 1, 1], [], []>} : vector<4x8xbf16>, vector<8x32xbf16>, vector<4x32xf32> -> vector<4x32xf32>
      %28 = arith.addf %18, %27 : vector<4x32xf32>
      %c4_i32_26 = arith.constant 4 : i32
      %29 = arith.muli %7, %c4_i32_26 : i32
      %c2_i32 = arith.constant 2 : i32
      %30 = arith.addi %29, %c2_i32 : i32
      %c0_27 = arith.constant 0 : index
      %31 = arith.index_cast %30 : i32 to index
      %c0_28 = arith.constant 0 : index
      %c0_29 = arith.constant 0 : index
      %32 = vector.load %arg2[%c0_27, %31, %c0_28, %c0_29] : memref<1x16x4x8xf32, #tpu.memory_space<vmem>>, vector<1x1x4x8xf32>
      %33 = vector.shape_cast %32 : vector<1x1x4x8xf32> to vector<4x8xf32>
      %34 = arith.truncf %33 : vector<4x8xf32> to vector<4x8xbf16>
      %c2_30 = arith.constant 2 : index
      %c0_31 = arith.constant 0 : index
      %c0_32 = arith.constant 0 : index
      %35 = vector.load %arg3[%c2_30, %c0_31, %c0_32] : memref<4x8x32xbf16, #tpu.memory_space<vmem>>, vector<1x8x32xbf16>
      %36 = vector.shape_cast %35 : vector<1x8x32xbf16> to vector<8x32xbf16>
      %cst_33 = arith.constant dense<0.000000e+00> : vector<4x32xf32>
      %37 = tpu.matmul %34, %36, %cst_33 {dimension_numbers = #tpu.dot_dimension_numbers<[1], [0], [0], [1], [0, 0, 1, 1], [], []>} : vector<4x8xbf16>, vector<8x32xbf16>, vector<4x32xf32> -> vector<4x32xf32>
      %38 = arith.addf %28, %37 : vector<4x32xf32>
      %c4_i32_34 = arith.constant 4 : i32
      %39 = arith.muli %7, %c4_i32_34 : i32
      %c3_i32 = arith.constant 3 : i32
      %40 = arith.addi %39, %c3_i32 : i32
      %c0_35 = arith.constant 0 : index
      %41 = arith.index_cast %40 : i32 to index
      %c0_36 = arith.constant 0 : index
      %c0_37 = arith.constant 0 : index
      %42 = vector.load %arg2[%c0_35, %41, %c0_36, %c0_37] : memref<1x16x4x8xf32, #tpu.memory_space<vmem>>, vector<1x1x4x8xf32>
      %43 = vector.shape_cast %42 : vector<1x1x4x8xf32> to vector<4x8xf32>
      %44 = arith.truncf %43 : vector<4x8xf32> to vector<4x8xbf16>
      %c3_38 = arith.constant 3 : index
      %c0_39 = arith.constant 0 : index
      %c0_40 = arith.constant 0 : index
      %45 = vector.load %arg3[%c3_38, %c0_39, %c0_40] : memref<4x8x32xbf16, #tpu.memory_space<vmem>>, vector<1x8x32xbf16>
      %46 = vector.shape_cast %45 : vector<1x8x32xbf16> to vector<8x32xbf16>
      %cst_41 = arith.constant dense<0.000000e+00> : vector<4x32xf32>
      %47 = tpu.matmul %44, %46, %cst_41 {dimension_numbers = #tpu.dot_dimension_numbers<[1], [0], [0], [1], [0, 0, 1, 1], [], []>} : vector<4x8xbf16>, vector<8x32xbf16>, vector<4x32xf32> -> vector<4x32xf32>
      %48 = arith.addf %38, %47 : vector<4x32xf32>
      %49 = vector.broadcast %0 : vector<1x32xf32> to vector<4x32xf32>
      %50 = arith.addf %48, %49 : vector<4x32xf32>
      %cst_42 = arith.constant dense<0.000000e+00> : vector<4xf32>
      %51 = vector.multi_reduction <add>, %50, %cst_42 [1] : vector<4x32xf32> to vector<4xf32>
      %52 = vector.shape_cast %51 : vector<4xf32> to vector<4x1xf32>
      %cst_43 = arith.constant 3.125000e-02 : f32
      %53 = vector.broadcast %cst_43 : f32 to vector<4x1xf32>
      %54 = arith.mulf %52, %53 : vector<4x1xf32>
      %55 = vector.broadcast %54 : vector<4x1xf32> to vector<4x32xf32>
      %56 = arith.subf %50, %55 : vector<4x32xf32>
      %57 = arith.mulf %56, %56 : vector<4x32xf32>
      %cst_44 = arith.constant dense<0.000000e+00> : vector<4xf32>
      %58 = vector.multi_reduction <add>, %57, %cst_44 [1] : vector<4x32xf32> to vector<4xf32>
      %59 = vector.shape_cast %58 : vector<4xf32> to vector<4x1xf32>
      %cst_45 = arith.constant 3.125000e-02 : f32
      %60 = vector.broadcast %cst_45 : f32 to vector<4x1xf32>
      %61 = arith.mulf %59, %60 : vector<4x1xf32>
      %cst_46 = arith.constant 9.99999974E-6 : f32
      %62 = vector.broadcast %cst_46 : f32 to vector<4x1xf32>
      %63 = arith.addf %61, %62 : vector<4x1xf32>
      %64 = math.rsqrt %63 : vector<4x1xf32>
      %65 = vector.broadcast %64 : vector<4x1xf32> to vector<4x32xf32>
      %66 = arith.mulf %56, %65 : vector<4x32xf32>
      %67 = vector.broadcast %1 : vector<1x32xf32> to vector<4x32xf32>
      %68 = arith.mulf %66, %67 : vector<4x32xf32>
      %69 = vector.broadcast %2 : vector<1x32xf32> to vector<4x32xf32>
      %70 = arith.addf %68, %69 : vector<4x32xf32>
      %cst_47 = arith.constant dense<0.000000e+00> : vector<4xf32>
      %71 = vector.multi_reduction <add>, %70, %cst_47 [1] : vector<4x32xf32> to vector<4xf32>
      %72 = vector.shape_cast %71 : vector<4xf32> to vector<4x1xf32>
      %cst_48 = arith.constant 3.125000e-02 : f32
      %73 = vector.broadcast %cst_48 : f32 to vector<4x1xf32>
      %74 = arith.mulf %72, %73 : vector<4x1xf32>
      %75 = vector.broadcast %74 : vector<4x1xf32> to vector<4x32xf32>
      %76 = arith.subf %70, %75 : vector<4x32xf32>
      %77 = arith.mulf %76, %76 : vector<4x32xf32>
      %cst_49 = arith.constant dense<0.000000e+00> : vector<4xf32>
      %78 = vector.multi_reduction <add>, %77, %cst_49 [1] : vector<4x32xf32> to vector<4xf32>
      %79 = vector.shape_cast %78 : vector<4xf32> to vector<4x1xf32>
      %cst_50 = arith.constant 3.125000e-02 : f32
      %80 = vector.broadcast %cst_50 : f32 to vector<4x1xf32>
      %81 = arith.mulf %79, %80 : vector<4x1xf32>
      %cst_51 = arith.constant 9.99999974E-6 : f32
      %82 = vector.broadcast %cst_51 : f32 to vector<4x1xf32>
      %83 = arith.addf %81, %82 : vector<4x1xf32>
      %84 = math.rsqrt %83 : vector<4x1xf32>
      %85 = vector.broadcast %84 : vector<4x1xf32> to vector<4x32xf32>
      %86 = arith.mulf %76, %85 : vector<4x32xf32>
      %87 = vector.broadcast %3 : vector<1x32xf32> to vector<4x32xf32>
      %88 = arith.mulf %86, %87 : vector<4x32xf32>
      %89 = vector.broadcast %4 : vector<1x32xf32> to vector<4x32xf32>
      %90 = arith.addf %88, %89 : vector<4x32xf32>
      %91 = arith.truncf %90 : vector<4x32xf32> to vector<4x32xbf16>
      %c0_52 = arith.constant 0 : index
      %92 = arith.index_cast %7 : i32 to index
      %c0_53 = arith.constant 0 : index
      %c0_54 = arith.constant 0 : index
      %93 = vector.load %arg5[%c0_52, %92, %c0_53, %c0_54] : memref<1x4x4x32xbf16, #tpu.memory_space<vmem>>, vector<1x1x4x32xbf16>
      %94 = vector.shape_cast %93 : vector<1x1x4x32xbf16> to vector<4x32xbf16>
      %95 = vector.shape_cast %91 : vector<4x32xbf16> to vector<1x1x4x32xbf16>
      tpu.vector_store %arg5[%c0_52, %92, %c0_53, %c0_54], %95 {strides = array<i32>} : memref<1x4x4x32xbf16, #tpu.memory_space<vmem>>, vector<1x1x4x32xbf16>,
    }
    %c4_i32_5 = arith.constant 4 : i32
    return
  }
  func.func @transform_0(%arg0: i32, %arg1: i32) -> (i32, i32, i32, i32) {
    %c0_i32 = arith.constant 0 : i32
    %c0_i32_0 = arith.constant 0 : i32
    %c0_i32_1 = arith.constant 0 : i32
    return %arg0, %arg1, %c0_i32, %c0_i32_0 : i32, i32, i32, i32
  }
  func.func @transform_1(%arg0: i32, %arg1: i32) -> (i32, i32, i32) {
    %c0_i32 = arith.constant 0 : i32
    %c0_i32_0 = arith.constant 0 : i32
    %c0_i32_1 = arith.constant 0 : i32
    %c0_i32_2 = arith.constant 0 : i32
    return %c0_i32, %c0_i32_0, %c0_i32_1 : i32, i32, i32
  }
  func.func @transform_2(%arg0: i32, %arg1: i32) -> (i32, i32) {
    %c0_i32 = arith.constant 0 : i32
    %c0_i32_0 = arith.constant 0 : i32
    %c0_i32_1 = arith.constant 0 : i32
    return %c0_i32, %c0_i32_0 : i32, i32
  }
  func.func @transform_3(%arg0: i32, %arg1: i32) -> (i32, i32, i32, i32) {
    %c0_i32 = arith.constant 0 : i32
    %c0_i32_0 = arith.constant 0 : i32
    %c0_i32_1 = arith.constant 0 : i32
    return %arg0, %arg1, %c0_i32, %c0_i32_0 : i32, i32, i32, i32
  }
}

module attributes {stable_mosaic.version = 11 : i64} {
  func.func @_flexi_embed_kernel(%arg0: i32, %arg1: i32, %arg2: memref<1x8x2x12xf32, #tpu.memory_space<vmem>>, %arg3: memref<4x12x32xbf16, #tpu.memory_space<vmem>>, %arg4: memref<8x32xf32, #tpu.memory_space<vmem>>, %arg5: memref<1x2x2x32xbf16, #tpu.memory_space<vmem>>) attributes {dimension_semantics = [#tpu.dimension_semantics<parallel>, #tpu.dimension_semantics<parallel>], iteration_bounds = array<i64: 2, 1>, scalar_prefetch = 0 : i64, scratch_operands = 0 : i64, tpu.core_type = #tpu.core_type<tc>, window_params = [{transform_indices = @transform_0, window_bounds = array<i64: 1, 8, 2, 12>}, {pipeline_mode = #tpu.pipeline_mode<synchronous>, transform_indices = @transform_1, window_bounds = array<i64: 4, 12, 32>}, {pipeline_mode = #tpu.pipeline_mode<synchronous>, transform_indices = @transform_2, window_bounds = array<i64: 8, 32>}, {transform_indices = @transform_3, window_bounds = array<i64: 1, 2, 2, 32>}]} {
    %c0 = arith.constant 0 : index
    %c0_0 = arith.constant 0 : index
    %0 = vector.load %arg4[%c0, %c0_0] : memref<8x32xf32, #tpu.memory_space<vmem>>, vector<1x32xf32>
    %c1 = arith.constant 1 : index
    %c0_1 = arith.constant 0 : index
    %1 = vector.load %arg4[%c1, %c0_1] : memref<8x32xf32, #tpu.memory_space<vmem>>, vector<1x32xf32>
    %c2 = arith.constant 2 : index
    %c0_2 = arith.constant 0 : index
    %2 = vector.load %arg4[%c2, %c0_2] : memref<8x32xf32, #tpu.memory_space<vmem>>, vector<1x32xf32>
    %c3 = arith.constant 3 : index
    %c0_3 = arith.constant 0 : index
    %3 = vector.load %arg4[%c3, %c0_3] : memref<8x32xf32, #tpu.memory_space<vmem>>, vector<1x32xf32>
    %c4 = arith.constant 4 : index
    %c0_4 = arith.constant 0 : index
    %4 = vector.load %arg4[%c4, %c0_4] : memref<8x32xf32, #tpu.memory_space<vmem>>, vector<1x32xf32>
    %c0_i32 = arith.constant 0 : i32
    %c2_i32 = arith.constant 2 : i32
    %5 = arith.addi %c0_i32, %c2_i32 : i32
    %c1_i32 = arith.constant 1 : i32
    scf.for %arg6 = %c0_i32 to %5 step %c1_i32  : i32 {
      %c1_i32_6 = arith.constant 1 : i32
      %6 = arith.muli %arg6, %c1_i32_6 : i32
      %c0_i32_7 = arith.constant 0 : i32
      %7 = arith.addi %c0_i32_7, %6 : i32
      %cst = arith.constant 0.000000e+00 : f32
      %8 = vector.broadcast %cst : f32 to vector<2x32xf32>
      %c4_i32 = arith.constant 4 : i32
      %9 = arith.muli %7, %c4_i32 : i32
      %c0_i32_8 = arith.constant 0 : i32
      %10 = arith.addi %9, %c0_i32_8 : i32
      %c0_9 = arith.constant 0 : index
      %11 = arith.index_cast %10 : i32 to index
      %c0_10 = arith.constant 0 : index
      %c0_11 = arith.constant 0 : index
      %12 = vector.load %arg2[%c0_9, %11, %c0_10, %c0_11] : memref<1x8x2x12xf32, #tpu.memory_space<vmem>>, vector<1x1x2x12xf32>
      %13 = vector.shape_cast %12 : vector<1x1x2x12xf32> to vector<2x12xf32>
      %14 = arith.truncf %13 : vector<2x12xf32> to vector<2x12xbf16>
      %c0_12 = arith.constant 0 : index
      %c0_13 = arith.constant 0 : index
      %c0_14 = arith.constant 0 : index
      %15 = vector.load %arg3[%c0_12, %c0_13, %c0_14] : memref<4x12x32xbf16, #tpu.memory_space<vmem>>, vector<1x12x32xbf16>
      %16 = vector.shape_cast %15 : vector<1x12x32xbf16> to vector<12x32xbf16>
      %cst_15 = arith.constant dense<0.000000e+00> : vector<2x32xf32>
      %17 = tpu.matmul %14, %16, %cst_15 {dimension_numbers = #tpu.dot_dimension_numbers<[1], [0], [0], [1], [0, 0, 1, 1], [], []>} : vector<2x12xbf16>, vector<12x32xbf16>, vector<2x32xf32> -> vector<2x32xf32>
      %18 = arith.addf %8, %17 : vector<2x32xf32>
      %c4_i32_16 = arith.constant 4 : i32
      %19 = arith.muli %7, %c4_i32_16 : i32
      %c1_i32_17 = arith.constant 1 : i32
      %20 = arith.addi %19, %c1_i32_17 : i32
      %c0_18 = arith.constant 0 : index
      %21 = arith.index_cast %20 : i32 to index
      %c0_19 = arith.constant 0 : index
      %c0_20 = arith.constant 0 : index
      %22 = vector.load %arg2[%c0_18, %21, %c0_19, %c0_20] : memref<1x8x2x12xf32, #tpu.memory_space<vmem>>, vector<1x1x2x12xf32>
      %23 = vector.shape_cast %22 : vector<1x1x2x12xf32> to vector<2x12xf32>
      %24 = arith.truncf %23 : vector<2x12xf32> to vector<2x12xbf16>
      %c1_21 = arith.constant 1 : index
      %c0_22 = arith.constant 0 : index
      %c0_23 = arith.constant 0 : index
      %25 = vector.load %arg3[%c1_21, %c0_22, %c0_23] : memref<4x12x32xbf16, #tpu.memory_space<vmem>>, vector<1x12x32xbf16>
      %26 = vector.shape_cast %25 : vector<1x12x32xbf16> to vector<12x32xbf16>
      %cst_24 = arith.constant dense<0.000000e+00> : vector<2x32xf32>
      %27 = tpu.matmul %24, %26, %cst_24 {dimension_numbers = #tpu.dot_dimension_numbers<[1], [0], [0], [1], [0, 0, 1, 1], [], []>} : vector<2x12xbf16>, vector<12x32xbf16>, vector<2x32xf32> -> vector<2x32xf32>
      %28 = arith.addf %18, %27 : vector<2x32xf32>
      %c4_i32_25 = arith.constant 4 : i32
      %29 = arith.muli %7, %c4_i32_25 : i32
      %c2_i32_26 = arith.constant 2 : i32
      %30 = arith.addi %29, %c2_i32_26 : i32
      %c0_27 = arith.constant 0 : index
      %31 = arith.index_cast %30 : i32 to index
      %c0_28 = arith.constant 0 : index
      %c0_29 = arith.constant 0 : index
      %32 = vector.load %arg2[%c0_27, %31, %c0_28, %c0_29] : memref<1x8x2x12xf32, #tpu.memory_space<vmem>>, vector<1x1x2x12xf32>
      %33 = vector.shape_cast %32 : vector<1x1x2x12xf32> to vector<2x12xf32>
      %34 = arith.truncf %33 : vector<2x12xf32> to vector<2x12xbf16>
      %c2_30 = arith.constant 2 : index
      %c0_31 = arith.constant 0 : index
      %c0_32 = arith.constant 0 : index
      %35 = vector.load %arg3[%c2_30, %c0_31, %c0_32] : memref<4x12x32xbf16, #tpu.memory_space<vmem>>, vector<1x12x32xbf16>
      %36 = vector.shape_cast %35 : vector<1x12x32xbf16> to vector<12x32xbf16>
      %cst_33 = arith.constant dense<0.000000e+00> : vector<2x32xf32>
      %37 = tpu.matmul %34, %36, %cst_33 {dimension_numbers = #tpu.dot_dimension_numbers<[1], [0], [0], [1], [0, 0, 1, 1], [], []>} : vector<2x12xbf16>, vector<12x32xbf16>, vector<2x32xf32> -> vector<2x32xf32>
      %38 = arith.addf %28, %37 : vector<2x32xf32>
      %c4_i32_34 = arith.constant 4 : i32
      %39 = arith.muli %7, %c4_i32_34 : i32
      %c3_i32 = arith.constant 3 : i32
      %40 = arith.addi %39, %c3_i32 : i32
      %c0_35 = arith.constant 0 : index
      %41 = arith.index_cast %40 : i32 to index
      %c0_36 = arith.constant 0 : index
      %c0_37 = arith.constant 0 : index
      %42 = vector.load %arg2[%c0_35, %41, %c0_36, %c0_37] : memref<1x8x2x12xf32, #tpu.memory_space<vmem>>, vector<1x1x2x12xf32>
      %43 = vector.shape_cast %42 : vector<1x1x2x12xf32> to vector<2x12xf32>
      %44 = arith.truncf %43 : vector<2x12xf32> to vector<2x12xbf16>
      %c3_38 = arith.constant 3 : index
      %c0_39 = arith.constant 0 : index
      %c0_40 = arith.constant 0 : index
      %45 = vector.load %arg3[%c3_38, %c0_39, %c0_40] : memref<4x12x32xbf16, #tpu.memory_space<vmem>>, vector<1x12x32xbf16>
      %46 = vector.shape_cast %45 : vector<1x12x32xbf16> to vector<12x32xbf16>
      %cst_41 = arith.constant dense<0.000000e+00> : vector<2x32xf32>
      %47 = tpu.matmul %44, %46, %cst_41 {dimension_numbers = #tpu.dot_dimension_numbers<[1], [0], [0], [1], [0, 0, 1, 1], [], []>} : vector<2x12xbf16>, vector<12x32xbf16>, vector<2x32xf32> -> vector<2x32xf32>
      %48 = arith.addf %38, %47 : vector<2x32xf32>
      %49 = vector.broadcast %0 : vector<1x32xf32> to vector<2x32xf32>
      %50 = arith.addf %48, %49 : vector<2x32xf32>
      %cst_42 = arith.constant dense<0.000000e+00> : vector<2xf32>
      %51 = vector.multi_reduction <add>, %50, %cst_42 [1] : vector<2x32xf32> to vector<2xf32>
      %52 = vector.shape_cast %51 : vector<2xf32> to vector<2x1xf32>
      %cst_43 = arith.constant 3.125000e-02 : f32
      %53 = vector.broadcast %cst_43 : f32 to vector<2x1xf32>
      %54 = arith.mulf %52, %53 : vector<2x1xf32>
      %55 = vector.broadcast %54 : vector<2x1xf32> to vector<2x32xf32>
      %56 = arith.subf %50, %55 : vector<2x32xf32>
      %57 = arith.mulf %56, %56 : vector<2x32xf32>
      %cst_44 = arith.constant dense<0.000000e+00> : vector<2xf32>
      %58 = vector.multi_reduction <add>, %57, %cst_44 [1] : vector<2x32xf32> to vector<2xf32>
      %59 = vector.shape_cast %58 : vector<2xf32> to vector<2x1xf32>
      %cst_45 = arith.constant 3.125000e-02 : f32
      %60 = vector.broadcast %cst_45 : f32 to vector<2x1xf32>
      %61 = arith.mulf %59, %60 : vector<2x1xf32>
      %cst_46 = arith.constant 9.99999974E-6 : f32
      %62 = vector.broadcast %cst_46 : f32 to vector<2x1xf32>
      %63 = arith.addf %61, %62 : vector<2x1xf32>
      %64 = math.rsqrt %63 : vector<2x1xf32>
      %65 = vector.broadcast %64 : vector<2x1xf32> to vector<2x32xf32>
      %66 = arith.mulf %56, %65 : vector<2x32xf32>
      %67 = vector.broadcast %1 : vector<1x32xf32> to vector<2x32xf32>
      %68 = arith.mulf %66, %67 : vector<2x32xf32>
      %69 = vector.broadcast %2 : vector<1x32xf32> to vector<2x32xf32>
      %70 = arith.addf %68, %69 : vector<2x32xf32>
      %cst_47 = arith.constant dense<0.000000e+00> : vector<2xf32>
      %71 = vector.multi_reduction <add>, %70, %cst_47 [1] : vector<2x32xf32> to vector<2xf32>
      %72 = vector.shape_cast %71 : vector<2xf32> to vector<2x1xf32>
      %cst_48 = arith.constant 3.125000e-02 : f32
      %73 = vector.broadcast %cst_48 : f32 to vector<2x1xf32>
      %74 = arith.mulf %72, %73 : vector<2x1xf32>
      %75 = vector.broadcast %74 : vector<2x1xf32> to vector<2x32xf32>
      %76 = arith.subf %70, %75 : vector<2x32xf32>
      %77 = arith.mulf %76, %76 : vector<2x32xf32>
      %cst_49 = arith.constant dense<0.000000e+00> : vector<2xf32>
      %78 = vector.multi_reduction <add>, %77, %cst_49 [1] : vector<2x32xf32> to vector<2xf32>
      %79 = vector.shape_cast %78 : vector<2xf32> to vector<2x1xf32>
      %cst_50 = arith.constant 3.125000e-02 : f32
      %80 = vector.broadcast %cst_50 : f32 to vector<2x1xf32>
      %81 = arith.mulf %79, %80 : vector<2x1xf32>
      %cst_51 = arith.constant 9.99999974E-6 : f32
      %82 = vector.broadcast %cst_51 : f32 to vector<2x1xf32>
      %83 = arith.addf %81, %82 : vector<2x1xf32>
      %84 = math.rsqrt %83 : vector<2x1xf32>
      %85 = vector.broadcast %84 : vector<2x1xf32> to vector<2x32xf32>
      %86 = arith.mulf %76, %85 : vector<2x32xf32>
      %87 = vector.broadcast %3 : vector<1x32xf32> to vector<2x32xf32>
      %88 = arith.mulf %86, %87 : vector<2x32xf32>
      %89 = vector.broadcast %4 : vector<1x32xf32> to vector<2x32xf32>
      %90 = arith.addf %88, %89 : vector<2x32xf32>
      %91 = arith.truncf %90 : vector<2x32xf32> to vector<2x32xbf16>
      %c0_52 = arith.constant 0 : index
      %92 = arith.index_cast %7 : i32 to index
      %c0_53 = arith.constant 0 : index
      %c0_54 = arith.constant 0 : index
      %93 = vector.load %arg5[%c0_52, %92, %c0_53, %c0_54] : memref<1x2x2x32xbf16, #tpu.memory_space<vmem>>, vector<1x1x2x32xbf16>
      %94 = vector.shape_cast %93 : vector<1x1x2x32xbf16> to vector<2x32xbf16>
      %95 = vector.shape_cast %91 : vector<2x32xbf16> to vector<1x1x2x32xbf16>
      tpu.vector_store %arg5[%c0_52, %92, %c0_53, %c0_54], %95 {strides = array<i32>} : memref<1x2x2x32xbf16, #tpu.memory_space<vmem>>, vector<1x1x2x32xbf16>,
    }
    %c2_i32_5 = arith.constant 2 : i32
    return
  }
  func.func @transform_0(%arg0: i32, %arg1: i32) -> (i32, i32, i32, i32) {
    %c0_i32 = arith.constant 0 : i32
    %c0_i32_0 = arith.constant 0 : i32
    %c0_i32_1 = arith.constant 0 : i32
    return %arg0, %arg1, %c0_i32, %c0_i32_0 : i32, i32, i32, i32
  }
  func.func @transform_1(%arg0: i32, %arg1: i32) -> (i32, i32, i32) {
    %c0_i32 = arith.constant 0 : i32
    %c0_i32_0 = arith.constant 0 : i32
    %c0_i32_1 = arith.constant 0 : i32
    %c0_i32_2 = arith.constant 0 : i32
    return %c0_i32, %c0_i32_0, %c0_i32_1 : i32, i32, i32
  }
  func.func @transform_2(%arg0: i32, %arg1: i32) -> (i32, i32) {
    %c0_i32 = arith.constant 0 : i32
    %c0_i32_0 = arith.constant 0 : i32
    %c0_i32_1 = arith.constant 0 : i32
    return %c0_i32, %c0_i32_0 : i32, i32
  }
  func.func @transform_3(%arg0: i32, %arg1: i32) -> (i32, i32, i32, i32) {
    %c0_i32 = arith.constant 0 : i32
    %c0_i32_0 = arith.constant 0 : i32
    %c0_i32_1 = arith.constant 0 : i32
    return %arg0, %arg1, %c0_i32, %c0_i32_0 : i32, i32, i32, i32
  }
}

</mosaic_0001>

<llo_original>
// kernel: flexi_input_patcher.3
$region0: #{flexi_input_patcher.3}
  #allocation0 [shape = 'u32[]', space=smem, size = 0x4, offset = 0x4, fixed_abs, tag = 'smem constant byte address 0x4 - core index']
  #allocation1 [shape = 'u32[144,128]{1,0:T(1,128)}', space=vmem, size = 0x12000, scoped, tag = 'internal scratch']
  %s0 = inlined_call_operand.vmem [shape: f32[2,16,4,88], index: 0, kind: input, shape index: {}]
  %s1 = inlined_call_operand.vmem [shape: bf16[4,88,32], index: 1, kind: input, shape index: {}]
  %s2 = inlined_call_operand.vmem [shape: f32[8,32], index: 2, kind: input, shape index: {}]
  %s3 = inlined_call_operand.hbm [shape: bf16[2,4,4,32], index: 3, kind: output, shape index: {}]
  %s4 = sld [smem:[#allocation0]]
  $region52: #{flexi_input_patcher.3} parent=0
    _
  %s6 = ssub.s32 1, %s4
  %s7 = scalar_select 0, %s6, %s4
  $region1: #{flexi_input_patcher.3} parent=0
    #allocation2 [shape = 'u8[8192]{0}', space=vmem, size = 0x2000, scoped, tag = 'output window, operand 0']
    #allocation3 [shape = 's32[2]{0}', space=sflag, size = 0x8, scoped, tag = 'scoped memory for flexi_input_patcher.3']
    %8 = vsyncpa [#allocation3], 0
    %s9 = scalar_lea.sflag [#allocation3], 1
    %10 = vsyncpa %s9, 0
    loop: start=0, step=1, limit=4
    $region2: #{flexi_input_patcher.3} parent=1 // loop_pre_header
      _
    $region3: #{flexi_input_patcher.3} parent=1 // loop_header
      %s12 = sphi 0, %s16
      %p13 = scmp.ge.s32.totalorder %s12, 4
      %s19 = sphi 0, %s31
      %s20 = sphi 0, %s27
      %s21 = sphi 0, %s19
      %s22 = sphi 0, %s20
      %s23 = sphi 0, %s21
      %s24 = sphi 0, %s22
      %s36 = sphi 0, %s38
      %s39 = sphi 0, %s36
      %s40 = sphi 0, %s39
      %s56 = sphi 0, %s40
      %s60 = sphi 0, %s60
      %s62 = sphi 0, %s60
      %s63 = sphi 0, %s62
      %s77 = sphi 0, %s63
      %s81 = sphi 0, %s81
      %s83 = sphi 0, %s81
      %s84 = sphi 0, %s83
      %s98 = sphi 0, %s84
      %s106 = sphi 0, %s108
      %s109 = sphi 0, %s106
      %s110 = sphi 0, %s109
      %s126 = sphi 0, %s110
    $region4: #{flexi_input_patcher.3} parent=1 // loop_header_branch
      %15 = sbr.rel (%p13) target = $region8
    $region5: #{flexi_input_patcher.3} parent=1 // loop_body
      %s17 = ssub.s32 %s12, 1
      %s18 = ssub.s32 %s12, 2
      %s25 = sadd.s32 1, %s20
      %p26 = scmp.ge.s32.totalorder %s25, 1
      %s27 = scalar_select %p26, 0, %s25
      %s28 = sadd.s32 1, %s19
      %s29 = scalar_select %p26, %s28, %s19
      %p30 = scmp.ge.s32.totalorder %s29, 2
      %s31 = scalar_select %p30, 0, %s29
      %s32 = ssub.s32 %s19, %s31
      %s33 = ssub.s32 %s20, %s27
      %s34 = sor.u32 %s32, %s33
      %p35 = scmp.eq.s32.totalorder %s34, 0
      %s37 = sadd.s32 %s36, 1
      %s38 = scalar_select %p35, %s36, %s37
      %p41 = pneg %p35
      %p42 = scmp.eq.s32.totalorder %s12, 1
      %p43 = por %p41, %p42
      %p44 = scmp.ne.s32.totalorder %s36, %s39
      %p45 = scmp.eq.s32.totalorder %s12, 0
      %p46 = por %p44, %p45
      %p47 = scmp.ne.s32.totalorder %s36, %s39
      %p48 = scmp.eq.s32.totalorder %s17, 1
      %p49 = por %p47, %p48
      %p50 = scmp.ne.s32.totalorder %s39, %s40
      %p51 = scmp.eq.s32.totalorder %s17, 0
      %p52 = por %p50, %p51
      %p53 = scmp.ne.s32.totalorder %s39, %s40
      %p54 = scmp.eq.s32.totalorder %s18, 1
      %p55 = por %p53, %p54
      %p57 = scmp.ne.s32.totalorder %s40, %s56
      %p58 = scmp.eq.s32.totalorder %s18, 0
      %p59 = por %p57, %p58
      %s61 = sadd.s32 %s60, 1
      %p64 = scmp.eq.s32.totalorder %s12, 1
      %p65 = scmp.ne.s32.totalorder %s60, %s62
      %p66 = scmp.eq.s32.totalorder %s12, 0
      %p67 = por %p65, %p66
      %p68 = scmp.ne.s32.totalorder %s60, %s62
      %p69 = scmp.eq.s32.totalorder %s17, 1
      %p70 = por %p68, %p69
      %p71 = scmp.ne.s32.totalorder %s62, %s63
      %p72 = scmp.eq.s32.totalorder %s17, 0
      %p73 = por %p71, %p72
      %p74 = scmp.ne.s32.totalorder %s62, %s63
      %p75 = scmp.eq.s32.totalorder %s18, 1
      %p76 = por %p74, %p75
      %p78 = scmp.ne.s32.totalorder %s63, %s77
      %p79 = scmp.eq.s32.totalorder %s18, 0
      %p80 = por %p78, %p79
      %s82 = sadd.s32 %s81, 1
      %p85 = scmp.eq.s32.totalorder %s12, 1
      %p86 = scmp.ne.s32.totalorder %s81, %s83
      %p87 = scmp.eq.s32.totalorder %s12, 0
      %p88 = por %p86, %p87
      %p89 = scmp.ne.s32.totalorder %s81, %s83
      %p90 = scmp.eq.s32.totalorder %s17, 1
      %p91 = por %p89, %p90
      %p92 = scmp.ne.s32.totalorder %s83, %s84
      %p93 = scmp.eq.s32.totalorder %s17, 0
      %p94 = por %p92, %p93
      %p95 = scmp.ne.s32.totalorder %s83, %s84
      %p96 = scmp.eq.s32.totalorder %s18, 1
      %p97 = por %p95, %p96
      %p99 = scmp.ne.s32.totalorder %s84, %s98
      %p100 = scmp.eq.s32.totalorder %s18, 0
      %p101 = por %p99, %p100
      %s102 = ssub.s32 %s19, %s31
      %s103 = ssub.s32 %s20, %s27
      %s104 = sor.u32 %s102, %s103
      %p105 = scmp.eq.s32.totalorder %s104, 0
      %s107 = sadd.s32 %s106, 1
      %s108 = scalar_select %p105, %s106, %s107
      %p111 = pneg %p105
      %p112 = scmp.eq.s32.totalorder %s12, 1
      %p113 = por %p111, %p112
      %p114 = scmp.ne.s32.totalorder %s106, %s109
      %p115 = scmp.eq.s32.totalorder %s12, 0
      %p116 = por %p114, %p115
      %p117 = scmp.ne.s32.totalorder %s106, %s109
      %p118 = scmp.eq.s32.totalorder %s17, 1
      %p119 = por %p117, %p118
      %p120 = scmp.ne.s32.totalorder %s109, %s110
      %p121 = scmp.eq.s32.totalorder %s17, 0
      %p122 = por %p120, %p121
      %p123 = scmp.ne.s32.totalorder %s109, %s110
      %p124 = scmp.eq.s32.totalorder %s18, 1
      %p125 = por %p123, %p124
      %p127 = scmp.ne.s32.totalorder %s110, %s126
      %p128 = scmp.eq.s32.totalorder %s18, 0
      %p129 = por %p127, %p128
      %p130 = scmp.le.s32.totalorder 1, %s12
      %p131 = scmp.lt.s32.totalorder %s12, 3
      %p132 = pnand %p130, %p131
      %p133 = pneg %p132
      // Predicated region
      $region9: #{flexi_input_patcher.3} parent=5 // pred_check
        _
      $region10: #{flexi_input_patcher.3} parent=5 // pred_check_branch
        %135 = sbr.rel (%p132) target = $region12
      $region11: #{flexi_input_patcher.3} parent=5 // pred_region
        %s136 = ssub.s32 %s12, 1
        // Predicated region
        $region13: #{flexi_input_patcher.3} parent=11 // pred_check
          %p137 = pneg %p73
        $region14: #{flexi_input_patcher.3} parent=11 // pred_check_branch
          %139 = sbr.rel (%p137) target = $region16
        $region15: #{flexi_input_patcher.3} parent=11 // pred_region
          _
        $region16: #{flexi_input_patcher.3} parent=11 // pred_fallthru
          _
        // Predicated region
        $region17: #{flexi_input_patcher.3} parent=11 // pred_check
          %p140 = pneg %p94
        $region18: #{flexi_input_patcher.3} parent=11 // pred_check_branch
          %142 = sbr.rel (%p140) target = $region20
        $region19: #{flexi_input_patcher.3} parent=11 // pred_region
          _
        $region20: #{flexi_input_patcher.3} parent=11 // pred_fallthru
          _
      $region12: #{flexi_input_patcher.3} parent=5 // pred_fallthru
        _
      %p143 = scmp.lt.s32.totalorder %s12, 2
      // Predicated region
      $region21: #{flexi_input_patcher.3} parent=5 // pred_check
        %p144 = pneg %p143
      $region22: #{flexi_input_patcher.3} parent=5 // pred_check_branch
        %146 = sbr.rel (%p144) target = $region24
      $region23: #{flexi_input_patcher.3} parent=5 // pred_region
        // Predicated region
        $region25: #{flexi_input_patcher.3} parent=23 // pred_check
          %p147 = pneg %p46
        $region26: #{flexi_input_patcher.3} parent=23 // pred_check_branch
          %149 = sbr.rel (%p147) target = $region28
        $region27: #{flexi_input_patcher.3} parent=23 // pred_region
          %s150 = smul.u32 16, %s20
          %p151 = scmp.lt.s32.totalorder %s19, 1
          %s152 = scalar_select %p151, %s19, 1
          %p153 = scmp.lt.s32.totalorder %s150, 15
          %s154 = scalar_select %p153, %s150, 15
          %s155 = smul.addr %s152, 16
          %s156 = sadd.s32 %s154, %s155
          %s157 = smul.addr %s156, 4
          %s158 = scalar_lea.vmem %s0, %s157
          %s159 = smul.u32 16, %s20
        $region28: #{flexi_input_patcher.3} parent=23 // pred_fallthru
          _
      $region24: #{flexi_input_patcher.3} parent=5 // pred_fallthru
        _
      %p160 = scmp.le.s32.totalorder 1, %s12
      %p161 = scmp.lt.s32.totalorder %s12, 3
      %p162 = pnand %p160, %p161
      %p163 = pneg %p162
      // Predicated region
      $region29: #{flexi_input_patcher.3} parent=5 // pred_check
        _
      $region30: #{flexi_input_patcher.3} parent=5 // pred_check_branch
        %165 = sbr.rel (%p162) target = $region32
      $region31: #{flexi_input_patcher.3} parent=5 // pred_region
        %s166 = ssub.s32 %s12, 1
        %s167 = smul.u32 16, %s22
        %p168 = scmp.lt.s32.totalorder %s21, 1
        %s169 = scalar_select %p168, %s21, 1
        %p170 = scmp.lt.s32.totalorder %s167, 15
        %s171 = scalar_select %p170, %s167, 15
        %s172 = smul.addr %s169, 16
        %s173 = sadd.s32 %s171, %s172
        %s174 = smul.addr %s173, 4
        %s175 = scalar_lea.vmem %s0, %s174
        %p176 = pneg %p52
        %p177 = pneg %p49
        %p178 = pneg %p73
        %p179 = pneg %p70
        %p180 = pneg %p94
        %p181 = pneg %p91
        %p182 = pneg %p122
        %p183 = pneg %p119
        %s184 = sand.u32 %s109, 1
        %s185 = scalar_lea.sflag [#allocation3], %s184
        %s186 = sand.u32 %s109, 1
        %s187 = smul.addr %s186, 8
        %s188 = scalar_lea.vmem [#allocation2], %s187
        %s189 = smul.u32 16, %s22
        %p190 = scmp.lt.s32.totalorder %s21, 1
        %s191 = scalar_select %p190, %s21, 1
        %p192 = scmp.lt.s32.totalorder %s189, 15
        %s193 = scalar_select %p192, %s189, 15
        %s194 = smul.addr %s191, 16
        %s195 = sadd.s32 %s193, %s194
        %s196 = smul.addr %s195, 4
        %s197 = scalar_lea.vmem %s0, %s196
        %s198 = smul.u32 16, %s22
        %s199 = smul.u32 4, %s22
        %v201 = vld [vmem:[%s2] sm:$0x1]
        %v202 = vld [vmem:[%s2 + $0x1] sm:$0x1]
        %v203 = vld [vmem:[%s2 + $0x2] sm:$0x1]
        %v204 = vld [vmem:[%s2 + $0x3] sm:$0x1]
        %v205 = vld [vmem:[%s2 + $0x4] sm:$0x1]
        loop: start=0, step=1, limit=4
        $region33: #{flexi_input_patcher.3} parent=31 // loop_pre_header
          _
        $region34: #{flexi_input_patcher.3} parent=31 // loop_header
          %s207 = sphi 0, %s211
          %p208 = scmp.ge.s32.totalorder %s207, 4
        $region35: #{flexi_input_patcher.3} parent=31 // loop_header_branch
          %210 = sbr.rel (%p208) target = $region39
        $region36: #{flexi_input_patcher.3} parent=31 // loop_body
          %s212 = smul.u32 %s207, 4
          %s213 = smul.u32 %s212, 4
          %s214 = scalar_lea.vmem %s197, %s213
          %v215 = vld [vmem:[%s214] sm:$0xf]
          %v216 = vpack.c.bf16 %v215, %v215
          %v217 = vld [vmem:[%s1] sm:$0xf]
          %v218 = vld [vmem:[%s1 + $0x4] sm:$0xf]
          %v219 = vld [vmem:[%s1 + $0x8] sm:$0xf]
          %v220 = vld [vmem:[%s1 + $0xc] sm:$0xf]
          %v221 = vld [vmem:[%s1 + $0x10] sm:$0xf]
          %v222 = vld [vmem:[%s1 + $0x14] sm:$0xf]
          %v223 = vld [vmem:[%s1 + $0x18] sm:$0xf]
          %v224 = vld [vmem:[%s1 + $0x1c] sm:$0xf]
          %v225 = vld [vmem:[%s1 + $0x20] sm:$0xf]
          %v226 = vld [vmem:[%s1 + $0x24] sm:$0xf]
          %v227 = vld [vmem:[%s1 + $0x28] sm:$0xf]
          %s228 = sadd.s32 %s212, 1
          %s229 = smul.u32 %s228, 4
          %s230 = scalar_lea.vmem %s197, %s229
          %v231 = vld [vmem:[%s230] sm:$0xf]
          %v232 = vpack.c.bf16 %v231, %v231
          %s233 = scalar_lea.vmem %s1, 44
          %v234 = vld [vmem:[%s233] sm:$0xf]
          %v235 = vld [vmem:[%s233 + $0x4] sm:$0xf]
          %v236 = vld [vmem:[%s233 + $0x8] sm:$0xf]
          %v237 = vld [vmem:[%s233 + $0xc] sm:$0xf]
          %v238 = vld [vmem:[%s233 + $0x10] sm:$0xf]
          %v239 = vld [vmem:[%s233 + $0x14] sm:$0xf]
          %v240 = vld [vmem:[%s233 + $0x18] sm:$0xf]
          %v241 = vld [vmem:[%s233 + $0x1c] sm:$0xf]
          %v242 = vld [vmem:[%s233 + $0x20] sm:$0xf]
          %v243 = vld [vmem:[%s233 + $0x24] sm:$0xf]
          %v244 = vld [vmem:[%s233 + $0x28] sm:$0xf]
          %v256 = vunpack.c.l.b16 %v234
          %v257 = vunpack.c.l.b16 %v235
          %v258 = vunpack.c.l.b16 %v236
          %v259 = vunpack.c.l.b16 %v237
          %v260 = vunpack.c.l.b16 %v238
          %v261 = vunpack.c.l.b16 %v239
          %v262 = vunpack.c.l.b16 %v240
          %v263 = vunpack.c.l.b16 %v241
          %v264 = vunpack.c.l.b16 %v242
          %v265 = vunpack.c.l.b16 %v243
          %v266 = vunpack.c.l.b16 %v244
          %v267 = vpack.c.b16 %v257, %v256
          %v268 = vpack.c.b16 %v259, %v258
          %v269 = vpack.c.b16 %v261, %v260
          %v270 = vpack.c.b16 %v263, %v262
          %v271 = vpack.c.b16 %v265, %v264
          %v272 = vpack.c.b16 %v266, %v266
          %vm278 = vcmask 719872
          %v280 = vsel %vm278, %v232, 0
          %vm282 = vcmask 1043456
          %v284 = vsel %vm282, %v272, 0
          %286 = vmatprep.subr.bf16.mxu0 0
          %287 = vmatpush1.bf16.msra.mxu0 %v267
          %288 = vmatprep.subr.bf16.mxu0 0
          %289 = vmatpush1.bf16.msra.mxu0 %v268
          %290 = vmatprep.subr.bf16.mxu0 0
          %291 = vmatpush1.bf16.msra.mxu0 %v269
          %292 = vmatprep.subr.bf16.mxu0 0
          %293 = vmatpush1.bf16.msra.mxu0 %v270
          %294 = vmatprep.subr.bf16.mxu0 0
          %295 = vmatpush1.bf16.msra.mxu0 %v271
          %296 = vmatprep.subr.bf16.mxu0 0
          %297 = vmatpush1.bf16.msra.mxu0 %v284
          %298 = vmatprep.subr.bf16.mxu0 0
          %299 = vmatpush1.bf16.msra.mxu0 0
          %300 = vmatprep.subr.bf16.mxu0 0
          %301 = vmatpush1.bf16.msra.mxu0 0
          %302 = vmatprep.subr.bf16.mxu0 0
          %303 = vmatpush1.bf16.msra.mxu0 0
          %304 = vmatprep.subr.bf16.mxu0 0
          %305 = vmatpush1.bf16.msra.mxu0 0
          %306 = vmatprep.subr.bf16.mxu0 0
          %307 = vmatpush1.bf16.msra.mxu0 0
          %308 = vmatprep.subr.bf16.mxu0 0
          %309 = vmatpush1.bf16.msra.mxu0 0
          %310 = vmatprep.subr.bf16.mxu0 0
          %311 = vmatpush1.bf16.msra.mxu0 0
          %312 = vmatprep.subr.bf16.mxu0 0
          %313 = vmatpush1.bf16.msra.mxu0 0
          %314 = vmatprep.subr.bf16.mxu0 0
          %315 = vmatpush1.bf16.msra.mxu0 0
          %316 = vmatprep.subr.bf16.mxu0 0
          %317 = vmatpush1.bf16.msra.mxu0 0
          %318 = vmatprep.mubr.bf16.mxu0 0
          %319 = vmatmul.mubr.bf16.gmra.mrb[0].mxu0 %v280
          %v320 = vpop.f32.mrb[0].mxu0
          %v321 = vadd.f32 0.0, %v320
          %v322 = vpop.f32.mrb[0].mxu0
          %v323 = vpop.f32.mrb[0].mxu0
          %v324 = vpop.f32.mrb[0].mxu0
          %325 = vdwg.mxu0
          %v337 = vunpack.c.l.b16 %v217
          %v338 = vunpack.c.l.b16 %v218
          %v339 = vunpack.c.l.b16 %v219
          %v340 = vunpack.c.l.b16 %v220
          %v341 = vunpack.c.l.b16 %v221
          %v342 = vunpack.c.l.b16 %v222
          %v343 = vunpack.c.l.b16 %v223
          %v344 = vunpack.c.l.b16 %v224
          %v345 = vunpack.c.l.b16 %v225
          %v346 = vunpack.c.l.b16 %v226
          %v347 = vunpack.c.l.b16 %v227
          %v348 = vpack.c.b16 %v338, %v337
          %v349 = vpack.c.b16 %v340, %v339
          %v350 = vpack.c.b16 %v342, %v341
          %v351 = vpack.c.b16 %v344, %v343
          %v352 = vpack.c.b16 %v346, %v345
          %v353 = vpack.c.b16 %v347, %v347
          %v360 = vsel %vm278, %v216, 0
          %v363 = vsel %vm282, %v353, 0
          %365 = vmatprep.subr.bf16.mxu0 0
          %366 = vmatpush1.bf16.msra.mxu0 %v348
          %367 = vmatprep.subr.bf16.mxu0 0
          %368 = vmatpush1.bf16.msra.mxu0 %v349
          %369 = vmatprep.subr.bf16.mxu0 0
          %370 = vmatpush1.bf16.msra.mxu0 %v350
          %371 = vmatprep.subr.bf16.mxu0 0
          %372 = vmatpush1.bf16.msra.mxu0 %v351
          %373 = vmatprep.subr.bf16.mxu0 0
          %374 = vmatpush1.bf16.msra.mxu0 %v352
          %375 = vmatprep.subr.bf16.mxu0 0
          %376 = vmatpush1.bf16.msra.mxu0 %v363
          %377 = vmatprep.subr.bf16.mxu0 0
          %378 = vmatpush1.bf16.msra.mxu0 0
          %379 = vmatprep.subr.bf16.mxu0 0
          %380 = vmatpush1.bf16.msra.mxu0 0
          %381 = vmatprep.subr.bf16.mxu0 0
          %382 = vmatpush1.bf16.msra.mxu0 0
          %383 = vmatprep.subr.bf16.mxu0 0
          %384 = vmatpush1.bf16.msra.mxu0 0
          %385 = vmatprep.subr.bf16.mxu0 0
          %386 = vmatpush1.bf16.msra.mxu0 0
          %387 = vmatprep.subr.bf16.mxu0 0
          %388 = vmatpush1.bf16.msra.mxu0 0
          %389 = vmatprep.subr.bf16.mxu0 0
          %390 = vmatpush1.bf16.msra.mxu0 0
          %391 = vmatprep.subr.bf16.mxu0 0
          %392 = vmatpush1.bf16.msra.mxu0 0
          %393 = vmatprep.subr.bf16.mxu0 0
          %394 = vmatpush1.bf16.msra.mxu0 0
          %395 = vmatprep.subr.bf16.mxu0 0
          %396 = vmatpush1.bf16.msra.mxu0 0
          %397 = vmatprep.mubr.bf16.mxu0 0
          %398 = vmatmul.mubr.bf16.gmra.mrb[0].mxu0 %v360
          %v399 = vpop.f32.mrb[0].mxu0
          %v400 = vadd.f32 %v321, %v399
          %v401 = vpop.f32.mrb[0].mxu0
          %v402 = vpop.f32.mrb[0].mxu0
          %v403 = vpop.f32.mrb[0].mxu0
          %404 = vdwg.mxu0
          %s405 = sadd.s32 %s212, 2
          %s406 = smul.u32 %s405, 4
          %s407 = scalar_lea.vmem %s197, %s406
          %v408 = vld [vmem:[%s407] sm:$0xf]
          %v409 = vpack.c.bf16 %v408, %v408
          %s410 = scalar_lea.vmem %s1, 88
          %v411 = vld [vmem:[%s410] sm:$0xf]
          %v412 = vld [vmem:[%s410 + $0x4] sm:$0xf]
          %v413 = vld [vmem:[%s410 + $0x8] sm:$0xf]
          %v414 = vld [vmem:[%s410 + $0xc] sm:$0xf]
          %v415 = vld [vmem:[%s410 + $0x10] sm:$0xf]
          %v416 = vld [vmem:[%s410 + $0x14] sm:$0xf]
          %v417 = vld [vmem:[%s410 + $0x18] sm:$0xf]
          %v418 = vld [vmem:[%s410 + $0x1c] sm:$0xf]
          %v419 = vld [vmem:[%s410 + $0x20] sm:$0xf]
          %v420 = vld [vmem:[%s410 + $0x24] sm:$0xf]
          %v421 = vld [vmem:[%s410 + $0x28] sm:$0xf]
          %v433 = vunpack.c.l.b16 %v411
          %v434 = vunpack.c.l.b16 %v412
          %v435 = vunpack.c.l.b16 %v413
          %v436 = vunpack.c.l.b16 %v414
          %v437 = vunpack.c.l.b16 %v415
          %v438 = vunpack.c.l.b16 %v416
          %v439 = vunpack.c.l.b16 %v417
          %v440 = vunpack.c.l.b16 %v418
          %v441 = vunpack.c.l.b16 %v419
          %v442 = vunpack.c.l.b16 %v420
          %v443 = vunpack.c.l.b16 %v421
          %v444 = vpack.c.b16 %v434, %v433
          %v445 = vpack.c.b16 %v436, %v435
          %v446 = vpack.c.b16 %v438, %v437
          %v447 = vpack.c.b16 %v440, %v439
          %v448 = vpack.c.b16 %v442, %v441
          %v449 = vpack.c.b16 %v443, %v443
          %v456 = vsel %vm278, %v409, 0
          %v459 = vsel %vm282, %v449, 0
          %461 = vmatprep.subr.bf16.mxu0 0
          %462 = vmatpush1.bf16.msra.mxu0 %v444
          %463 = vmatprep.subr.bf16.mxu0 0
          %464 = vmatpush1.bf16.msra.mxu0 %v445
          %465 = vmatprep.subr.bf16.mxu0 0
          %466 = vmatpush1.bf16.msra.mxu0 %v446
          %467 = vmatprep.subr.bf16.mxu0 0
          %468 = vmatpush1.bf16.msra.mxu0 %v447
          %469 = vmatprep.subr.bf16.mxu0 0
          %470 = vmatpush1.bf16.msra.mxu0 %v448
          %471 = vmatprep.subr.bf16.mxu0 0
          %472 = vmatpush1.bf16.msra.mxu0 %v459
          %473 = vmatprep.subr.bf16.mxu0 0
          %474 = vmatpush1.bf16.msra.mxu0 0
          %475 = vmatprep.subr.bf16.mxu0 0
          %476 = vmatpush1.bf16.msra.mxu0 0
          %477 = vmatprep.subr.bf16.mxu0 0
          %478 = vmatpush1.bf16.msra.mxu0 0
          %479 = vmatprep.subr.bf16.mxu0 0
          %480 = vmatpush1.bf16.msra.mxu0 0
          %481 = vmatprep.subr.bf16.mxu0 0
          %482 = vmatpush1.bf16.msra.mxu0 0
          %483 = vmatprep.subr.bf16.mxu0 0
          %484 = vmatpush1.bf16.msra.mxu0 0
          %485 = vmatprep.subr.bf16.mxu0 0
          %486 = vmatpush1.bf16.msra.mxu0 0
          %487 = vmatprep.subr.bf16.mxu0 0
          %488 = vmatpush1.bf16.msra.mxu0 0
          %489 = vmatprep.subr.bf16.mxu0 0
          %490 = vmatpush1.bf16.msra.mxu0 0
          %491 = vmatprep.subr.bf16.mxu0 0
          %492 = vmatpush1.bf16.msra.mxu0 0
          %493 = vmatprep.mubr.bf16.mxu0 0
          %494 = vmatmul.mubr.bf16.gmra.mrb[0].mxu0 %v456
          %v495 = vpop.f32.mrb[0].mxu0
          %v496 = vadd.f32 0.0, %v495
          %v497 = vpop.f32.mrb[0].mxu0
          %v498 = vpop.f32.mrb[0].mxu0
          %v499 = vpop.f32.mrb[0].mxu0
          %500 = vdwg.mxu0
          %v501 = vadd.f32 %v400, %v496
          %s502 = sadd.s32 %s212, 3
          %s503 = smul.u32 %s502, 4
          %s504 = scalar_lea.vmem %s197, %s503
          %v505 = vld [vmem:[%s504] sm:$0xf]
          %v506 = vpack.c.bf16 %v505, %v505
          %s507 = scalar_lea.vmem %s1, 132
          %v508 = vld [vmem:[%s507] sm:$0xf]
          %v509 = vld [vmem:[%s507 + $0x4] sm:$0xf]
          %v510 = vld [vmem:[%s507 + $0x8] sm:$0xf]
          %v511 = vld [vmem:[%s507 + $0xc] sm:$0xf]
          %v512 = vld [vmem:[%s507 + $0x10] sm:$0xf]
          %v513 = vld [vmem:[%s507 + $0x14] sm:$0xf]
          %v514 = vld [vmem:[%s507 + $0x18] sm:$0xf]
          %v515 = vld [vmem:[%s507 + $0x1c] sm:$0xf]
          %v516 = vld [vmem:[%s507 + $0x20] sm:$0xf]
          %v517 = vld [vmem:[%s507 + $0x24] sm:$0xf]
          %v518 = vld [vmem:[%s507 + $0x28] sm:$0xf]
          %v530 = vunpack.c.l.b16 %v508
          %v531 = vunpack.c.l.b16 %v509
          %v532 = vunpack.c.l.b16 %v510
          %v533 = vunpack.c.l.b16 %v511
          %v534 = vunpack.c.l.b16 %v512
          %v535 = vunpack.c.l.b16 %v513
          %v536 = vunpack.c.l.b16 %v514
          %v537 = vunpack.c.l.b16 %v515
          %v538 = vunpack.c.l.b16 %v516
          %v539 = vunpack.c.l.b16 %v517
          %v540 = vunpack.c.l.b16 %v518
          %v541 = vpack.c.b16 %v531, %v530
          %v542 = vpack.c.b16 %v533, %v532
          %v543 = vpack.c.b16 %v535, %v534
          %v544 = vpack.c.b16 %v537, %v536
          %v545 = vpack.c.b16 %v539, %v538
          %v546 = vpack.c.b16 %v540, %v540
          %v553 = vsel %vm278, %v506, 0
          %v556 = vsel %vm282, %v546, 0
          %558 = vmatprep.subr.bf16.mxu0 0
          %559 = vmatpush1.bf16.msra.mxu0 %v541
          %560 = vmatprep.subr.bf16.mxu0 0
          %561 = vmatpush1.bf16.msra.mxu0 %v542
          %562 = vmatprep.subr.bf16.mxu0 0
          %563 = vmatpush1.bf16.msra.mxu0 %v543
          %564 = vmatprep.subr.bf16.mxu0 0
          %565 = vmatpush1.bf16.msra.mxu0 %v544
          %566 = vmatprep.subr.bf16.mxu0 0
          %567 = vmatpush1.bf16.msra.mxu0 %v545
          %568 = vmatprep.subr.bf16.mxu0 0
          %569 = vmatpush1.bf16.msra.mxu0 %v556
          %570 = vmatprep.subr.bf16.mxu0 0
          %571 = vmatpush1.bf16.msra.mxu0 0
          %572 = vmatprep.subr.bf16.mxu0 0
          %573 = vmatpush1.bf16.msra.mxu0 0
          %574 = vmatprep.subr.bf16.mxu0 0
          %575 = vmatpush1.bf16.msra.mxu0 0
          %576 = vmatprep.subr.bf16.mxu0 0
          %577 = vmatpush1.bf16.msra.mxu0 0
          %578 = vmatprep.subr.bf16.mxu0 0
          %579 = vmatpush1.bf16.msra.mxu0 0
          %580 = vmatprep.subr.bf16.mxu0 0
          %581 = vmatpush1.bf16.msra.mxu0 0
          %582 = vmatprep.subr.bf16.mxu0 0
          %583 = vmatpush1.bf16.msra.mxu0 0
          %584 = vmatprep.subr.bf16.mxu0 0
          %585 = vmatpush1.bf16.msra.mxu0 0
          %586 = vmatprep.subr.bf16.mxu0 0
          %587 = vmatpush1.bf16.msra.mxu0 0
          %588 = vmatprep.subr.bf16.mxu0 0
          %589 = vmatpush1.bf16.msra.mxu0 0
          %590 = vmatprep.mubr.bf16.mxu0 0
          %591 = vmatmul.mubr.bf16.gmra.mrb[0].mxu0 %v553
          %v592 = vpop.f32.mrb[0].mxu0
          %v593 = vadd.f32 0.0, %v592
          %v594 = vpop.f32.mrb[0].mxu0
          %v595 = vpop.f32.mrb[0].mxu0
          %v596 = vpop.f32.mrb[0].mxu0
          %597 = vdwg.mxu0
          %v598 = vadd.f32 %v501, %v593
          %v599 = vlaneseq
          %v600 = vshrl.u32 %v599, 7
          %v601 = vsub.s32 0, %v600
          %v602 = vrot.slane %v201, %v601
          %v603 = vadd.f32 %v598, %v602
          %vm604 = vcmask 257024
          %v605 = vsel %vm604, %v603, 0.0
          %606 = vadd.xlane.f32.xlu0 %v605
          %v607 = vpop.xlane.xlu0 %606
          %v608 = vmul.f32 %v607, 0.03125
          %v609 = vsub.f32 %v603, %v608
          %v610 = vmul.f32 %v609, %v609
          %v611 = vsel %vm604, %v610, 0.0
          %612 = vadd.xlane.f32.xlu0 %v611
          %v613 = vpop.xlane.xlu0 %612
          %v614 = vmul.f32 %v613, 0.03125
          %v615 = vadd.f32 %v614, 1e-05
          %v616 = vrsqrt.pop %v615
          %v617 = vmul.f32 %v609, %v616
          %v618 = vlaneseq
          %v619 = vshrl.u32 %v618, 7
          %v620 = vsub.s32 0, %v619
          %v621 = vrot.slane %v202, %v620
          %v622 = vmul.f32 %v617, %v621
          %v623 = vlaneseq
          %v624 = vshrl.u32 %v623, 7
          %v625 = vsub.s32 0, %v624
          %v626 = vrot.slane %v203, %v625
          %v627 = vadd.f32 %v622, %v626
          %v628 = vsel %vm604, %v627, 0.0
          %629 = vadd.xlane.f32.xlu0 %v628
          %v630 = vpop.xlane.xlu0 %629
          %v631 = vmul.f32 %v630, 0.03125
          %v632 = vsub.f32 %v627, %v631
          %v633 = vmul.f32 %v632, %v632
          %v634 = vsel %vm604, %v633, 0.0
          %635 = vadd.xlane.f32.xlu0 %v634
          %v636 = vpop.xlane.xlu0 %635
          %v637 = vmul.f32 %v636, 0.03125
          %v638 = vadd.f32 %v637, 1e-05
          %v639 = vrsqrt.pop %v638
          %v640 = vmul.f32 %v632, %v639
          %v641 = vlaneseq
          %v642 = vshrl.u32 %v641, 7
          %v643 = vsub.s32 0, %v642
          %v644 = vrot.slane %v204, %v643
          %v645 = vmul.f32 %v640, %v644
          %v646 = vlaneseq
          %v647 = vshrl.u32 %v646, 7
          %v648 = vsub.s32 0, %v647
          %v649 = vrot.slane %v205, %v648
          %v650 = vadd.f32 %v645, %v649
          %v651 = vpack.c.bf16 %v650, %v650
          %s652 = smul.addr %s207, 2
          %s653 = scalar_lea.vmem %s188, %s652 [#allocation2]
          %vm654 = vcmask 254976
          %655 = vst.msk [vmem:[%s653] sm:$0x3] %vm654, %v651
        $region37: #{flexi_input_patcher.3} parent=31 // loop_footer
          %s211 = sadd.s32 1, %s207
        $region38: #{flexi_input_patcher.3} parent=31 // loop_footer_branch
          %206 = sbr.rel target = $region34
        $region39: #{flexi_input_patcher.3} parent=31 // loop_exit
          _
        %s656 = sand.u32 %s109, 1
        %s657 = scalar_lea.sflag [#allocation3], %s656
        %s658 = sand.u32 %s109, 1
        %s659 = smul.addr %s658, 8
        %s660 = scalar_lea.vmem [#allocation2], %s659
        // Predicated region
        $region40: #{flexi_input_patcher.3} parent=31 // pred_check
          %p661 = pneg %p119
        $region41: #{flexi_input_patcher.3} parent=31 // pred_check_branch
          %663 = sbr.rel (%p661) target = $region43
        $region42: #{flexi_input_patcher.3} parent=31 // pred_region
          %s664 = smul.u32 4, %s22
          %s666 = ssub.s32 128, 128
          %667 = vsyncadd %s657, %s666
          %s668 = smul.addr %s21, 4
          %s669 = sadd.s32 %s664, %s668
          %s670 = smul.addr %s669, 32
          %s671 = scalar_lea.hbm %s3, %s670
          %s672 = sshll.u32 %s660, 4
          %s673 = int_to_ptr.vmem [resolvable:$true] %s672
          %678 = dma.vmem_to_hbm [thread:$0]  %s673, 128, %s671, %s657, 32, 32, 2
        $region43: #{flexi_input_patcher.3} parent=31 // pred_fallthru
          _
      $region32: #{flexi_input_patcher.3} parent=5 // pred_fallthru
        _
      %p679 = scmp.le.s32.totalorder 2, %s12
      // Predicated region
      $region44: #{flexi_input_patcher.3} parent=5 // pred_check
        %p680 = pneg %p679
      $region45: #{flexi_input_patcher.3} parent=5 // pred_check_branch
        %682 = sbr.rel (%p680) target = $region47
      $region46: #{flexi_input_patcher.3} parent=5 // pred_region
        %s683 = ssub.s32 %s12, 2
        // Predicated region
        $region48: #{flexi_input_patcher.3} parent=46 // pred_check
          %p684 = pneg %p125
        $region49: #{flexi_input_patcher.3} parent=46 // pred_check_branch
          %686 = sbr.rel (%p684) target = $region51
        $region50: #{flexi_input_patcher.3} parent=46 // pred_region
          %s687 = sand.u32 %s110, 1
          %s688 = scalar_lea.sflag [#allocation3], %s687
          %s689 = sand.u32 %s110, 1
          %s690 = smul.addr %s689, 8
          %s691 = scalar_lea.vmem [#allocation2], %s690
          %692 = dma.done %s688, 128
        $region51: #{flexi_input_patcher.3} parent=46 // pred_fallthru
          _
      $region47: #{flexi_input_patcher.3} parent=5 // pred_fallthru
        _
    $region6: #{flexi_input_patcher.3} parent=1 // loop_footer
      %s16 = sadd.s32 1, %s12
    $region7: #{flexi_input_patcher.3} parent=1 // loop_footer_branch
      %11 = sbr.rel target = $region3
    $region8: #{flexi_input_patcher.3} parent=1 // loop_exit
      _
    %693 = vsyncpa [#allocation3], 1
    %s694 = scalar_lea.sflag [#allocation3], 1
    %695 = vsyncpa %s694, 1

// kernel: flexi_input_patcher.5
$region0: #{flexi_input_patcher.5}
  #allocation0 [shape = 'u32[]', space=smem, size = 0x4, offset = 0x4, fixed_abs, tag = 'smem constant byte address 0x4 - core index']
  #allocation1 [shape = 'u32[144,128]{1,0:T(1,128)}', space=vmem, size = 0x12000, scoped, tag = 'internal scratch']
  %s0 = inlined_call_operand.vmem [shape: f32[2,16,4,8], index: 0, kind: input, shape index: {}]
  %s1 = inlined_call_operand.vmem [shape: bf16[4,8,32], index: 1, kind: input, shape index: {}]
  %s2 = inlined_call_operand.vmem [shape: f32[8,32], index: 2, kind: input, shape index: {}]
  %s3 = inlined_call_operand.hbm [shape: bf16[2,4,4,32], index: 3, kind: output, shape index: {}]
  %s4 = sld [smem:[#allocation0]]
  $region52: #{flexi_input_patcher.5} parent=0
    _
  %s6 = ssub.s32 1, %s4
  %s7 = scalar_select 0, %s6, %s4
  $region1: #{flexi_input_patcher.5} parent=0
    #allocation2 [shape = 'u8[8192]{0}', space=vmem, size = 0x2000, scoped, tag = 'output window, operand 0']
    #allocation3 [shape = 's32[2]{0}', space=sflag, size = 0x8, scoped, tag = 'scoped memory for flexi_input_patcher.5']
    %8 = vsyncpa [#allocation3], 0
    %s9 = scalar_lea.sflag [#allocation3], 1
    %10 = vsyncpa %s9, 0
    loop: start=0, step=1, limit=4
    $region2: #{flexi_input_patcher.5} parent=1 // loop_pre_header
      _
    $region3: #{flexi_input_patcher.5} parent=1 // loop_header
      %s12 = sphi 0, %s16
      %p13 = scmp.ge.s32.totalorder %s12, 4
      %s19 = sphi 0, %s31
      %s20 = sphi 0, %s27
      %s21 = sphi 0, %s19
      %s22 = sphi 0, %s20
      %s23 = sphi 0, %s21
      %s24 = sphi 0, %s22
      %s36 = sphi 0, %s38
      %s39 = sphi 0, %s36
      %s40 = sphi 0, %s39
      %s56 = sphi 0, %s40
      %s60 = sphi 0, %s60
      %s62 = sphi 0, %s60
      %s63 = sphi 0, %s62
      %s77 = sphi 0, %s63
      %s81 = sphi 0, %s81
      %s83 = sphi 0, %s81
      %s84 = sphi 0, %s83
      %s98 = sphi 0, %s84
      %s106 = sphi 0, %s108
      %s109 = sphi 0, %s106
      %s110 = sphi 0, %s109
      %s126 = sphi 0, %s110
    $region4: #{flexi_input_patcher.5} parent=1 // loop_header_branch
      %15 = sbr.rel (%p13) target = $region8
    $region5: #{flexi_input_patcher.5} parent=1 // loop_body
      %s17 = ssub.s32 %s12, 1
      %s18 = ssub.s32 %s12, 2
      %s25 = sadd.s32 1, %s20
      %p26 = scmp.ge.s32.totalorder %s25, 1
      %s27 = scalar_select %p26, 0, %s25
      %s28 = sadd.s32 1, %s19
      %s29 = scalar_select %p26, %s28, %s19
      %p30 = scmp.ge.s32.totalorder %s29, 2
      %s31 = scalar_select %p30, 0, %s29
      %s32 = ssub.s32 %s19, %s31
      %s33 = ssub.s32 %s20, %s27
      %s34 = sor.u32 %s32, %s33
      %p35 = scmp.eq.s32.totalorder %s34, 0
      %s37 = sadd.s32 %s36, 1
      %s38 = scalar_select %p35, %s36, %s37
      %p41 = pneg %p35
      %p42 = scmp.eq.s32.totalorder %s12, 1
      %p43 = por %p41, %p42
      %p44 = scmp.ne.s32.totalorder %s36, %s39
      %p45 = scmp.eq.s32.totalorder %s12, 0
      %p46 = por %p44, %p45
      %p47 = scmp.ne.s32.totalorder %s36, %s39
      %p48 = scmp.eq.s32.totalorder %s17, 1
      %p49 = por %p47, %p48
      %p50 = scmp.ne.s32.totalorder %s39, %s40
      %p51 = scmp.eq.s32.totalorder %s17, 0
      %p52 = por %p50, %p51
      %p53 = scmp.ne.s32.totalorder %s39, %s40
      %p54 = scmp.eq.s32.totalorder %s18, 1
      %p55 = por %p53, %p54
      %p57 = scmp.ne.s32.totalorder %s40, %s56
      %p58 = scmp.eq.s32.totalorder %s18, 0
      %p59 = por %p57, %p58
      %s61 = sadd.s32 %s60, 1
      %p64 = scmp.eq.s32.totalorder %s12, 1
      %p65 = scmp.ne.s32.totalorder %s60, %s62
      %p66 = scmp.eq.s32.totalorder %s12, 0
      %p67 = por %p65, %p66
      %p68 = scmp.ne.s32.totalorder %s60, %s62
      %p69 = scmp.eq.s32.totalorder %s17, 1
      %p70 = por %p68, %p69
      %p71 = scmp.ne.s32.totalorder %s62, %s63
      %p72 = scmp.eq.s32.totalorder %s17, 0
      %p73 = por %p71, %p72
      %p74 = scmp.ne.s32.totalorder %s62, %s63
      %p75 = scmp.eq.s32.totalorder %s18, 1
      %p76 = por %p74, %p75
      %p78 = scmp.ne.s32.totalorder %s63, %s77
      %p79 = scmp.eq.s32.totalorder %s18, 0
      %p80 = por %p78, %p79
      %s82 = sadd.s32 %s81, 1
      %p85 = scmp.eq.s32.totalorder %s12, 1
      %p86 = scmp.ne.s32.totalorder %s81, %s83
      %p87 = scmp.eq.s32.totalorder %s12, 0
      %p88 = por %p86, %p87
      %p89 = scmp.ne.s32.totalorder %s81, %s83
      %p90 = scmp.eq.s32.totalorder %s17, 1
      %p91 = por %p89, %p90
      %p92 = scmp.ne.s32.totalorder %s83, %s84
      %p93 = scmp.eq.s32.totalorder %s17, 0
      %p94 = por %p92, %p93
      %p95 = scmp.ne.s32.totalorder %s83, %s84
      %p96 = scmp.eq.s32.totalorder %s18, 1
      %p97 = por %p95, %p96
      %p99 = scmp.ne.s32.totalorder %s84, %s98
      %p100 = scmp.eq.s32.totalorder %s18, 0
      %p101 = por %p99, %p100
      %s102 = ssub.s32 %s19, %s31
      %s103 = ssub.s32 %s20, %s27
      %s104 = sor.u32 %s102, %s103
      %p105 = scmp.eq.s32.totalorder %s104, 0
      %s107 = sadd.s32 %s106, 1
      %s108 = scalar_select %p105, %s106, %s107
      %p111 = pneg %p105
      %p112 = scmp.eq.s32.totalorder %s12, 1
      %p113 = por %p111, %p112
      %p114 = scmp.ne.s32.totalorder %s106, %s109
      %p115 = scmp.eq.s32.totalorder %s12, 0
      %p116 = por %p114, %p115
      %p117 = scmp.ne.s32.totalorder %s106, %s109
      %p118 = scmp.eq.s32.totalorder %s17, 1
      %p119 = por %p117, %p118
      %p120 = scmp.ne.s32.totalorder %s109, %s110
      %p121 = scmp.eq.s32.totalorder %s17, 0
      %p122 = por %p120, %p121
      %p123 = scmp.ne.s32.totalorder %s109, %s110
      %p124 = scmp.eq.s32.totalorder %s18, 1
      %p125 = por %p123, %p124
      %p127 = scmp.ne.s32.totalorder %s110, %s126
      %p128 = scmp.eq.s32.totalorder %s18, 0
      %p129 = por %p127, %p128
      %p130 = scmp.le.s32.totalorder 1, %s12
      %p131 = scmp.lt.s32.totalorder %s12, 3
      %p132 = pnand %p130, %p131
      %p133 = pneg %p132
      // Predicated region
      $region9: #{flexi_input_patcher.5} parent=5 // pred_check
        _
      $region10: #{flexi_input_patcher.5} parent=5 // pred_check_branch
        %135 = sbr.rel (%p132) target = $region12
      $region11: #{flexi_input_patcher.5} parent=5 // pred_region
        %s136 = ssub.s32 %s12, 1
        // Predicated region
        $region13: #{flexi_input_patcher.5} parent=11 // pred_check
          %p137 = pneg %p73
        $region14: #{flexi_input_patcher.5} parent=11 // pred_check_branch
          %139 = sbr.rel (%p137) target = $region16
        $region15: #{flexi_input_patcher.5} parent=11 // pred_region
          _
        $region16: #{flexi_input_patcher.5} parent=11 // pred_fallthru
          _
        // Predicated region
        $region17: #{flexi_input_patcher.5} parent=11 // pred_check
          %p140 = pneg %p94
        $region18: #{flexi_input_patcher.5} parent=11 // pred_check_branch
          %142 = sbr.rel (%p140) target = $region20
        $region19: #{flexi_input_patcher.5} parent=11 // pred_region
          _
        $region20: #{flexi_input_patcher.5} parent=11 // pred_fallthru
          _
      $region12: #{flexi_input_patcher.5} parent=5 // pred_fallthru
        _
      %p143 = scmp.lt.s32.totalorder %s12, 2
      // Predicated region
      $region21: #{flexi_input_patcher.5} parent=5 // pred_check
        %p144 = pneg %p143
      $region22: #{flexi_input_patcher.5} parent=5 // pred_check_branch
        %146 = sbr.rel (%p144) target = $region24
      $region23: #{flexi_input_patcher.5} parent=5 // pred_region
        // Predicated region
        $region25: #{flexi_input_patcher.5} parent=23 // pred_check
          %p147 = pneg %p46
        $region26: #{flexi_input_patcher.5} parent=23 // pred_check_branch
          %149 = sbr.rel (%p147) target = $region28
        $region27: #{flexi_input_patcher.5} parent=23 // pred_region
          %s150 = smul.u32 16, %s20
          %p151 = scmp.lt.s32.totalorder %s19, 1
          %s152 = scalar_select %p151, %s19, 1
          %p153 = scmp.lt.s32.totalorder %s150, 15
          %s154 = scalar_select %p153, %s150, 15
          %s155 = smul.addr %s152, 16
          %s156 = sadd.s32 %s154, %s155
          %s157 = smul.addr %s156, 4
          %s158 = scalar_lea.vmem %s0, %s157
          %s159 = smul.u32 16, %s20
        $region28: #{flexi_input_patcher.5} parent=23 // pred_fallthru
          _
      $region24: #{flexi_input_patcher.5} parent=5 // pred_fallthru
        _
      %p160 = scmp.le.s32.totalorder 1, %s12
      %p161 = scmp.lt.s32.totalorder %s12, 3
      %p162 = pnand %p160, %p161
      %p163 = pneg %p162
      // Predicated region
      $region29: #{flexi_input_patcher.5} parent=5 // pred_check
        _
      $region30: #{flexi_input_patcher.5} parent=5 // pred_check_branch
        %165 = sbr.rel (%p162) target = $region32
      $region31: #{flexi_input_patcher.5} parent=5 // pred_region
        %s166 = ssub.s32 %s12, 1
        %s167 = smul.u32 16, %s22
        %p168 = scmp.lt.s32.totalorder %s21, 1
        %s169 = scalar_select %p168, %s21, 1
        %p170 = scmp.lt.s32.totalorder %s167, 15
        %s171 = scalar_select %p170, %s167, 15
        %s172 = smul.addr %s169, 16
        %s173 = sadd.s32 %s171, %s172
        %s174 = smul.addr %s173, 4
        %s175 = scalar_lea.vmem %s0, %s174
        %p176 = pneg %p52
        %p177 = pneg %p49
        %p178 = pneg %p73
        %p179 = pneg %p70
        %p180 = pneg %p94
        %p181 = pneg %p91
        %p182 = pneg %p122
        %p183 = pneg %p119
        %s184 = sand.u32 %s109, 1
        %s185 = scalar_lea.sflag [#allocation3], %s184
        %s186 = sand.u32 %s109, 1
        %s187 = smul.addr %s186, 8
        %s188 = scalar_lea.vmem [#allocation2], %s187
        %s189 = smul.u32 16, %s22
        %p190 = scmp.lt.s32.totalorder %s21, 1
        %s191 = scalar_select %p190, %s21, 1
        %p192 = scmp.lt.s32.totalorder %s189, 15
        %s193 = scalar_select %p192, %s189, 15
        %s194 = smul.addr %s191, 16
        %s195 = sadd.s32 %s193, %s194
        %s196 = smul.addr %s195, 4
        %s197 = scalar_lea.vmem %s0, %s196
        %s198 = smul.u32 16, %s22
        %s199 = smul.u32 4, %s22
        %v201 = vld [vmem:[%s2] sm:$0x1]
        %v202 = vld [vmem:[%s2 + $0x1] sm:$0x1]
        %v203 = vld [vmem:[%s2 + $0x2] sm:$0x1]
        %v204 = vld [vmem:[%s2 + $0x3] sm:$0x1]
        %v205 = vld [vmem:[%s2 + $0x4] sm:$0x1]
        loop: start=0, step=1, limit=4
        $region33: #{flexi_input_patcher.5} parent=31 // loop_pre_header
          _
        $region34: #{flexi_input_patcher.5} parent=31 // loop_header
          %s207 = sphi 0, %s211
          %p208 = scmp.ge.s32.totalorder %s207, 4
        $region35: #{flexi_input_patcher.5} parent=31 // loop_header_branch
          %210 = sbr.rel (%p208) target = $region39
        $region36: #{flexi_input_patcher.5} parent=31 // loop_body
          %s212 = smul.u32 %s207, 4
          %s213 = smul.u32 %s212, 4
          %s214 = scalar_lea.vmem %s197, %s213
          %v215 = vld [vmem:[%s214] sm:$0xf]
          %v216 = vpack.c.bf16 %v215, %v215
          %v217 = vld [vmem:[%s1] sm:$0xf]
          %s218 = sadd.s32 %s212, 1
          %s219 = smul.u32 %s218, 4
          %s220 = scalar_lea.vmem %s197, %s219
          %v221 = vld [vmem:[%s220] sm:$0xf]
          %v222 = vpack.c.bf16 %v221, %v221
          %s223 = scalar_lea.vmem %s1, 4
          %v224 = vld [vmem:[%s223] sm:$0xf]
          %vm225 = vcmask 64512
          %v227 = vsel %vm225, %v222, 0
          %vm229 = vcmask 1043456
          %v231 = vsel %vm229, %v224, 0
          %233 = vmatprep.subr.bf16.mxu0 0
          %234 = vmatpush1.bf16.msra.mxu0 %v231
          %235 = vmatprep.subr.bf16.mxu0 0
          %236 = vmatpush1.bf16.msra.mxu0 0
          %237 = vmatprep.subr.bf16.mxu0 0
          %238 = vmatpush1.bf16.msra.mxu0 0
          %239 = vmatprep.subr.bf16.mxu0 0
          %240 = vmatpush1.bf16.msra.mxu0 0
          %241 = vmatprep.subr.bf16.mxu0 0
          %242 = vmatpush1.bf16.msra.mxu0 0
          %243 = vmatprep.subr.bf16.mxu0 0
          %244 = vmatpush1.bf16.msra.mxu0 0
          %245 = vmatprep.subr.bf16.mxu0 0
          %246 = vmatpush1.bf16.msra.mxu0 0
          %247 = vmatprep.subr.bf16.mxu0 0
          %248 = vmatpush1.bf16.msra.mxu0 0
          %249 = vmatprep.subr.bf16.mxu0 0
          %250 = vmatpush1.bf16.msra.mxu0 0
          %251 = vmatprep.subr.bf16.mxu0 0
          %252 = vmatpush1.bf16.msra.mxu0 0
          %253 = vmatprep.subr.bf16.mxu0 0
          %254 = vmatpush1.bf16.msra.mxu0 0
          %255 = vmatprep.subr.bf16.mxu0 0
          %256 = vmatpush1.bf16.msra.mxu0 0
          %257 = vmatprep.subr.bf16.mxu0 0
          %258 = vmatpush1.bf16.msra.mxu0 0
          %259 = vmatprep.subr.bf16.mxu0 0
          %260 = vmatpush1.bf16.msra.mxu0 0
          %261 = vmatprep.subr.bf16.mxu0 0
          %262 = vmatpush1.bf16.msra.mxu0 0
          %263 = vmatprep.subr.bf16.mxu0 0
          %264 = vmatpush1.bf16.msra.mxu0 0
          %265 = vmatprep.mubr.bf16.mxu0 0
          %266 = vmatmul.mubr.bf16.gmra.mrb[0].mxu0 %v227
          %v267 = vpop.f32.mrb[0].mxu0
          %v268 = vadd.f32 0.0, %v267
          %v269 = vpop.f32.mrb[0].mxu0
          %v270 = vpop.f32.mrb[0].mxu0
          %v271 = vpop.f32.mrb[0].mxu0
          %272 = vdwg.mxu0
          %v274 = vsel %vm225, %v216, 0
          %v277 = vsel %vm229, %v217, 0
          %279 = vmatprep.subr.bf16.mxu0 0
          %280 = vmatpush1.bf16.msra.mxu0 %v277
          %281 = vmatprep.subr.bf16.mxu0 0
          %282 = vmatpush1.bf16.msra.mxu0 0
          %283 = vmatprep.subr.bf16.mxu0 0
          %284 = vmatpush1.bf16.msra.mxu0 0
          %285 = vmatprep.subr.bf16.mxu0 0
          %286 = vmatpush1.bf16.msra.mxu0 0
          %287 = vmatprep.subr.bf16.mxu0 0
          %288 = vmatpush1.bf16.msra.mxu0 0
          %289 = vmatprep.subr.bf16.mxu0 0
          %290 = vmatpush1.bf16.msra.mxu0 0
          %291 = vmatprep.subr.bf16.mxu0 0
          %292 = vmatpush1.bf16.msra.mxu0 0
          %293 = vmatprep.subr.bf16.mxu0 0
          %294 = vmatpush1.bf16.msra.mxu0 0
          %295 = vmatprep.subr.bf16.mxu0 0
          %296 = vmatpush1.bf16.msra.mxu0 0
          %297 = vmatprep.subr.bf16.mxu0 0
          %298 = vmatpush1.bf16.msra.mxu0 0
          %299 = vmatprep.subr.bf16.mxu0 0
          %300 = vmatpush1.bf16.msra.mxu0 0
          %301 = vmatprep.subr.bf16.mxu0 0
          %302 = vmatpush1.bf16.msra.mxu0 0
          %303 = vmatprep.subr.bf16.mxu0 0
          %304 = vmatpush1.bf16.msra.mxu0 0
          %305 = vmatprep.subr.bf16.mxu0 0
          %306 = vmatpush1.bf16.msra.mxu0 0
          %307 = vmatprep.subr.bf16.mxu0 0
          %308 = vmatpush1.bf16.msra.mxu0 0
          %309 = vmatprep.subr.bf16.mxu0 0
          %310 = vmatpush1.bf16.msra.mxu0 0
          %311 = vmatprep.mubr.bf16.mxu0 0
          %312 = vmatmul.mubr.bf16.gmra.mrb[0].mxu0 %v274
          %v313 = vpop.f32.mrb[0].mxu0
          %v314 = vadd.f32 %v268, %v313
          %v315 = vpop.f32.mrb[0].mxu0
          %v316 = vpop.f32.mrb[0].mxu0
          %v317 = vpop.f32.mrb[0].mxu0
          %318 = vdwg.mxu0
          %s319 = sadd.s32 %s212, 2
          %s320 = smul.u32 %s319, 4
          %s321 = scalar_lea.vmem %s197, %s320
          %v322 = vld [vmem:[%s321] sm:$0xf]
          %v323 = vpack.c.bf16 %v322, %v322
          %s324 = scalar_lea.vmem %s1, 8
          %v325 = vld [vmem:[%s324] sm:$0xf]
          %v327 = vsel %vm225, %v323, 0
          %v330 = vsel %vm229, %v325, 0
          %332 = vmatprep.subr.bf16.mxu0 0
          %333 = vmatpush1.bf16.msra.mxu0 %v330
          %334 = vmatprep.subr.bf16.mxu0 0
          %335 = vmatpush1.bf16.msra.mxu0 0
          %336 = vmatprep.subr.bf16.mxu0 0
          %337 = vmatpush1.bf16.msra.mxu0 0
          %338 = vmatprep.subr.bf16.mxu0 0
          %339 = vmatpush1.bf16.msra.mxu0 0
          %340 = vmatprep.subr.bf16.mxu0 0
          %341 = vmatpush1.bf16.msra.mxu0 0
          %342 = vmatprep.subr.bf16.mxu0 0
          %343 = vmatpush1.bf16.msra.mxu0 0
          %344 = vmatprep.subr.bf16.mxu0 0
          %345 = vmatpush1.bf16.msra.mxu0 0
          %346 = vmatprep.subr.bf16.mxu0 0
          %347 = vmatpush1.bf16.msra.mxu0 0
          %348 = vmatprep.subr.bf16.mxu0 0
          %349 = vmatpush1.bf16.msra.mxu0 0
          %350 = vmatprep.subr.bf16.mxu0 0
          %351 = vmatpush1.bf16.msra.mxu0 0
          %352 = vmatprep.subr.bf16.mxu0 0
          %353 = vmatpush1.bf16.msra.mxu0 0
          %354 = vmatprep.subr.bf16.mxu0 0
          %355 = vmatpush1.bf16.msra.mxu0 0
          %356 = vmatprep.subr.bf16.mxu0 0
          %357 = vmatpush1.bf16.msra.mxu0 0
          %358 = vmatprep.subr.bf16.mxu0 0
          %359 = vmatpush1.bf16.msra.mxu0 0
          %360 = vmatprep.subr.bf16.mxu0 0
          %361 = vmatpush1.bf16.msra.mxu0 0
          %362 = vmatprep.subr.bf16.mxu0 0
          %363 = vmatpush1.bf16.msra.mxu0 0
          %364 = vmatprep.mubr.bf16.mxu0 0
          %365 = vmatmul.mubr.bf16.gmra.mrb[0].mxu0 %v327
          %v366 = vpop.f32.mrb[0].mxu0
          %v367 = vadd.f32 0.0, %v366
          %v368 = vpop.f32.mrb[0].mxu0
          %v369 = vpop.f32.mrb[0].mxu0
          %v370 = vpop.f32.mrb[0].mxu0
          %371 = vdwg.mxu0
          %v372 = vadd.f32 %v314, %v367
          %s373 = sadd.s32 %s212, 3
          %s374 = smul.u32 %s373, 4
          %s375 = scalar_lea.vmem %s197, %s374
          %v376 = vld [vmem:[%s375] sm:$0xf]
          %v377 = vpack.c.bf16 %v376, %v376
          %s378 = scalar_lea.vmem %s1, 12
          %v379 = vld [vmem:[%s378] sm:$0xf]
          %v381 = vsel %vm225, %v377, 0
          %v384 = vsel %vm229, %v379, 0
          %386 = vmatprep.subr.bf16.mxu0 0
          %387 = vmatpush1.bf16.msra.mxu0 %v384
          %388 = vmatprep.subr.bf16.mxu0 0
          %389 = vmatpush1.bf16.msra.mxu0 0
          %390 = vmatprep.subr.bf16.mxu0 0
          %391 = vmatpush1.bf16.msra.mxu0 0
          %392 = vmatprep.subr.bf16.mxu0 0
          %393 = vmatpush1.bf16.msra.mxu0 0
          %394 = vmatprep.subr.bf16.mxu0 0
          %395 = vmatpush1.bf16.msra.mxu0 0
          %396 = vmatprep.subr.bf16.mxu0 0
          %397 = vmatpush1.bf16.msra.mxu0 0
          %398 = vmatprep.subr.bf16.mxu0 0
          %399 = vmatpush1.bf16.msra.mxu0 0
          %400 = vmatprep.subr.bf16.mxu0 0
          %401 = vmatpush1.bf16.msra.mxu0 0
          %402 = vmatprep.subr.bf16.mxu0 0
          %403 = vmatpush1.bf16.msra.mxu0 0
          %404 = vmatprep.subr.bf16.mxu0 0
          %405 = vmatpush1.bf16.msra.mxu0 0
          %406 = vmatprep.subr.bf16.mxu0 0
          %407 = vmatpush1.bf16.msra.mxu0 0
          %408 = vmatprep.subr.bf16.mxu0 0
          %409 = vmatpush1.bf16.msra.mxu0 0
          %410 = vmatprep.subr.bf16.mxu0 0
          %411 = vmatpush1.bf16.msra.mxu0 0
          %412 = vmatprep.subr.bf16.mxu0 0
          %413 = vmatpush1.bf16.msra.mxu0 0
          %414 = vmatprep.subr.bf16.mxu0 0
          %415 = vmatpush1.bf16.msra.mxu0 0
          %416 = vmatprep.subr.bf16.mxu0 0
          %417 = vmatpush1.bf16.msra.mxu0 0
          %418 = vmatprep.mubr.bf16.mxu0 0
          %419 = vmatmul.mubr.bf16.gmra.mrb[0].mxu0 %v381
          %v420 = vpop.f32.mrb[0].mxu0
          %v421 = vadd.f32 0.0, %v420
          %v422 = vpop.f32.mrb[0].mxu0
          %v423 = vpop.f32.mrb[0].mxu0
          %v424 = vpop.f32.mrb[0].mxu0
          %425 = vdwg.mxu0
          %v426 = vadd.f32 %v372, %v421
          %v427 = vlaneseq
          %v428 = vshrl.u32 %v427, 7
          %v429 = vsub.s32 0, %v428
          %v430 = vrot.slane %v201, %v429
          %v431 = vadd.f32 %v426, %v430
          %vm432 = vcmask 257024
          %v433 = vsel %vm432, %v431, 0.0
          %434 = vadd.xlane.f32.xlu0 %v433
          %v435 = vpop.xlane.xlu0 %434
          %v436 = vmul.f32 %v435, 0.03125
          %v437 = vsub.f32 %v431, %v436
          %v438 = vmul.f32 %v437, %v437
          %v439 = vsel %vm432, %v438, 0.0
          %440 = vadd.xlane.f32.xlu0 %v439
          %v441 = vpop.xlane.xlu0 %440
          %v442 = vmul.f32 %v441, 0.03125
          %v443 = vadd.f32 %v442, 1e-05
          %v444 = vrsqrt.pop %v443
          %v445 = vmul.f32 %v437, %v444
          %v446 = vlaneseq
          %v447 = vshrl.u32 %v446, 7
          %v448 = vsub.s32 0, %v447
          %v449 = vrot.slane %v202, %v448
          %v450 = vmul.f32 %v445, %v449
          %v451 = vlaneseq
          %v452 = vshrl.u32 %v451, 7
          %v453 = vsub.s32 0, %v452
          %v454 = vrot.slane %v203, %v453
          %v455 = vadd.f32 %v450, %v454
          %v456 = vsel %vm432, %v455, 0.0
          %457 = vadd.xlane.f32.xlu0 %v456
          %v458 = vpop.xlane.xlu0 %457
          %v459 = vmul.f32 %v458, 0.03125
          %v460 = vsub.f32 %v455, %v459
          %v461 = vmul.f32 %v460, %v460
          %v462 = vsel %vm432, %v461, 0.0
          %463 = vadd.xlane.f32.xlu0 %v462
          %v464 = vpop.xlane.xlu0 %463
          %v465 = vmul.f32 %v464, 0.03125
          %v466 = vadd.f32 %v465, 1e-05
          %v467 = vrsqrt.pop %v466
          %v468 = vmul.f32 %v460, %v467
          %v469 = vlaneseq
          %v470 = vshrl.u32 %v469, 7
          %v471 = vsub.s32 0, %v470
          %v472 = vrot.slane %v204, %v471
          %v473 = vmul.f32 %v468, %v472
          %v474 = vlaneseq
          %v475 = vshrl.u32 %v474, 7
          %v476 = vsub.s32 0, %v475
          %v477 = vrot.slane %v205, %v476
          %v478 = vadd.f32 %v473, %v477
          %v479 = vpack.c.bf16 %v478, %v478
          %s480 = smul.addr %s207, 2
          %s481 = scalar_lea.vmem %s188, %s480 [#allocation2]
          %vm482 = vcmask 254976
          %483 = vst.msk [vmem:[%s481] sm:$0x3] %vm482, %v479
        $region37: #{flexi_input_patcher.5} parent=31 // loop_footer
          %s211 = sadd.s32 1, %s207
        $region38: #{flexi_input_patcher.5} parent=31 // loop_footer_branch
          %206 = sbr.rel target = $region34
        $region39: #{flexi_input_patcher.5} parent=31 // loop_exit
          _
        %s484 = sand.u32 %s109, 1
        %s485 = scalar_lea.sflag [#allocation3], %s484
        %s486 = sand.u32 %s109, 1
        %s487 = smul.addr %s486, 8
        %s488 = scalar_lea.vmem [#allocation2], %s487
        // Predicated region
        $region40: #{flexi_input_patcher.5} parent=31 // pred_check
          %p489 = pneg %p119
        $region41: #{flexi_input_patcher.5} parent=31 // pred_check_branch
          %491 = sbr.rel (%p489) target = $region43
        $region42: #{flexi_input_patcher.5} parent=31 // pred_region
          %s492 = smul.u32 4, %s22
          %s494 = ssub.s32 128, 128
          %495 = vsyncadd %s485, %s494
          %s496 = smul.addr %s21, 4
          %s497 = sadd.s32 %s492, %s496
          %s498 = smul.addr %s497, 32
          %s499 = scalar_lea.hbm %s3, %s498
          %s500 = sshll.u32 %s488, 4
          %s501 = int_to_ptr.vmem [resolvable:$true] %s500
          %506 = dma.vmem_to_hbm [thread:$0]  %s501, 128, %s499, %s485, 32, 32, 2
        $region43: #{flexi_input_patcher.5} parent=31 // pred_fallthru
          _
      $region32: #{flexi_input_patcher.5} parent=5 // pred_fallthru
        _
      %p507 = scmp.le.s32.totalorder 2, %s12
      // Predicated region
      $region44: #{flexi_input_patcher.5} parent=5 // pred_check
        %p508 = pneg %p507
      $region45: #{flexi_input_patcher.5} parent=5 // pred_check_branch
        %510 = sbr.rel (%p508) target = $region47
      $region46: #{flexi_input_patcher.5} parent=5 // pred_region
        %s511 = ssub.s32 %s12, 2
        // Predicated region
        $region48: #{flexi_input_patcher.5} parent=46 // pred_check
          %p512 = pneg %p125
        $region49: #{flexi_input_patcher.5} parent=46 // pred_check_branch
          %514 = sbr.rel (%p512) target = $region51
        $region50: #{flexi_input_patcher.5} parent=46 // pred_region
          %s515 = sand.u32 %s110, 1
          %s516 = scalar_lea.sflag [#allocation3], %s515
          %s517 = sand.u32 %s110, 1
          %s518 = smul.addr %s517, 8
          %s519 = scalar_lea.vmem [#allocation2], %s518
          %520 = dma.done %s516, 128
        $region51: #{flexi_input_patcher.5} parent=46 // pred_fallthru
          _
      $region47: #{flexi_input_patcher.5} parent=5 // pred_fallthru
        _
    $region6: #{flexi_input_patcher.5} parent=1 // loop_footer
      %s16 = sadd.s32 1, %s12
    $region7: #{flexi_input_patcher.5} parent=1 // loop_footer_branch
      %11 = sbr.rel target = $region3
    $region8: #{flexi_input_patcher.5} parent=1 // loop_exit
      _
    %521 = vsyncpa [#allocation3], 1
    %s522 = scalar_lea.sflag [#allocation3], 1
    %523 = vsyncpa %s522, 1

// kernel: flexi_input_patcher.4
$region0: #{flexi_input_patcher.4}
  #allocation0 [shape = 'u32[]', space=smem, size = 0x4, offset = 0x4, fixed_abs, tag = 'smem constant byte address 0x4 - core index']
  #allocation1 [shape = 'u32[144,128]{1,0:T(1,128)}', space=vmem, size = 0x12000, scoped, tag = 'internal scratch']
  %s0 = inlined_call_operand.vmem [shape: f32[2,8,2,12], index: 0, kind: input, shape index: {}]
  %s1 = inlined_call_operand.vmem [shape: bf16[4,12,32], index: 1, kind: input, shape index: {}]
  %s2 = inlined_call_operand.vmem [shape: f32[8,32], index: 2, kind: input, shape index: {}]
  %s3 = inlined_call_operand.hbm [shape: bf16[2,2,2,32], index: 3, kind: output, shape index: {}]
  %s4 = sld [smem:[#allocation0]]
  $region52: #{flexi_input_patcher.4} parent=0
    _
  %s6 = ssub.s32 1, %s4
  %s7 = scalar_select 0, %s6, %s4
  $region1: #{flexi_input_patcher.4} parent=0
    #allocation2 [shape = 'u8[2048]{0}', space=vmem, size = 0x800, scoped, tag = 'output window, operand 0']
    #allocation3 [shape = 's32[2]{0}', space=sflag, size = 0x8, scoped, tag = 'scoped memory for flexi_input_patcher.4']
    %8 = vsyncpa [#allocation3], 0
    %s9 = scalar_lea.sflag [#allocation3], 1
    %10 = vsyncpa %s9, 0
    loop: start=0, step=1, limit=4
    $region2: #{flexi_input_patcher.4} parent=1 // loop_pre_header
      _
    $region3: #{flexi_input_patcher.4} parent=1 // loop_header
      %s12 = sphi 0, %s16
      %p13 = scmp.ge.s32.totalorder %s12, 4
      %s19 = sphi 0, %s31
      %s20 = sphi 0, %s27
      %s21 = sphi 0, %s19
      %s22 = sphi 0, %s20
      %s23 = sphi 0, %s21
      %s24 = sphi 0, %s22
      %s36 = sphi 0, %s38
      %s39 = sphi 0, %s36
      %s40 = sphi 0, %s39
      %s56 = sphi 0, %s40
      %s60 = sphi 0, %s60
      %s62 = sphi 0, %s60
      %s63 = sphi 0, %s62
      %s77 = sphi 0, %s63
      %s81 = sphi 0, %s81
      %s83 = sphi 0, %s81
      %s84 = sphi 0, %s83
      %s98 = sphi 0, %s84
      %s106 = sphi 0, %s108
      %s109 = sphi 0, %s106
      %s110 = sphi 0, %s109
      %s126 = sphi 0, %s110
    $region4: #{flexi_input_patcher.4} parent=1 // loop_header_branch
      %15 = sbr.rel (%p13) target = $region8
    $region5: #{flexi_input_patcher.4} parent=1 // loop_body
      %s17 = ssub.s32 %s12, 1
      %s18 = ssub.s32 %s12, 2
      %s25 = sadd.s32 1, %s20
      %p26 = scmp.ge.s32.totalorder %s25, 1
      %s27 = scalar_select %p26, 0, %s25
      %s28 = sadd.s32 1, %s19
      %s29 = scalar_select %p26, %s28, %s19
      %p30 = scmp.ge.s32.totalorder %s29, 2
      %s31 = scalar_select %p30, 0, %s29
      %s32 = ssub.s32 %s19, %s31
      %s33 = ssub.s32 %s20, %s27
      %s34 = sor.u32 %s32, %s33
      %p35 = scmp.eq.s32.totalorder %s34, 0
      %s37 = sadd.s32 %s36, 1
      %s38 = scalar_select %p35, %s36, %s37
      %p41 = pneg %p35
      %p42 = scmp.eq.s32.totalorder %s12, 1
      %p43 = por %p41, %p42
      %p44 = scmp.ne.s32.totalorder %s36, %s39
      %p45 = scmp.eq.s32.totalorder %s12, 0
      %p46 = por %p44, %p45
      %p47 = scmp.ne.s32.totalorder %s36, %s39
      %p48 = scmp.eq.s32.totalorder %s17, 1
      %p49 = por %p47, %p48
      %p50 = scmp.ne.s32.totalorder %s39, %s40
      %p51 = scmp.eq.s32.totalorder %s17, 0
      %p52 = por %p50, %p51
      %p53 = scmp.ne.s32.totalorder %s39, %s40
      %p54 = scmp.eq.s32.totalorder %s18, 1
      %p55 = por %p53, %p54
      %p57 = scmp.ne.s32.totalorder %s40, %s56
      %p58 = scmp.eq.s32.totalorder %s18, 0
      %p59 = por %p57, %p58
      %s61 = sadd.s32 %s60, 1
      %p64 = scmp.eq.s32.totalorder %s12, 1
      %p65 = scmp.ne.s32.totalorder %s60, %s62
      %p66 = scmp.eq.s32.totalorder %s12, 0
      %p67 = por %p65, %p66
      %p68 = scmp.ne.s32.totalorder %s60, %s62
      %p69 = scmp.eq.s32.totalorder %s17, 1
      %p70 = por %p68, %p69
      %p71 = scmp.ne.s32.totalorder %s62, %s63
      %p72 = scmp.eq.s32.totalorder %s17, 0
      %p73 = por %p71, %p72
      %p74 = scmp.ne.s32.totalorder %s62, %s63
      %p75 = scmp.eq.s32.totalorder %s18, 1
      %p76 = por %p74, %p75
      %p78 = scmp.ne.s32.totalorder %s63, %s77
      %p79 = scmp.eq.s32.totalorder %s18, 0
      %p80 = por %p78, %p79
      %s82 = sadd.s32 %s81, 1
      %p85 = scmp.eq.s32.totalorder %s12, 1
      %p86 = scmp.ne.s32.totalorder %s81, %s83
      %p87 = scmp.eq.s32.totalorder %s12, 0
      %p88 = por %p86, %p87
      %p89 = scmp.ne.s32.totalorder %s81, %s83
      %p90 = scmp.eq.s32.totalorder %s17, 1
      %p91 = por %p89, %p90
      %p92 = scmp.ne.s32.totalorder %s83, %s84
      %p93 = scmp.eq.s32.totalorder %s17, 0
      %p94 = por %p92, %p93
      %p95 = scmp.ne.s32.totalorder %s83, %s84
      %p96 = scmp.eq.s32.totalorder %s18, 1
      %p97 = por %p95, %p96
      %p99 = scmp.ne.s32.totalorder %s84, %s98
      %p100 = scmp.eq.s32.totalorder %s18, 0
      %p101 = por %p99, %p100
      %s102 = ssub.s32 %s19, %s31
      %s103 = ssub.s32 %s20, %s27
      %s104 = sor.u32 %s102, %s103
      %p105 = scmp.eq.s32.totalorder %s104, 0
      %s107 = sadd.s32 %s106, 1
      %s108 = scalar_select %p105, %s106, %s107
      %p111 = pneg %p105
      %p112 = scmp.eq.s32.totalorder %s12, 1
      %p113 = por %p111, %p112
      %p114 = scmp.ne.s32.totalorder %s106, %s109
      %p115 = scmp.eq.s32.totalorder %s12, 0
      %p116 = por %p114, %p115
      %p117 = scmp.ne.s32.totalorder %s106, %s109
      %p118 = scmp.eq.s32.totalorder %s17, 1
      %p119 = por %p117, %p118
      %p120 = scmp.ne.s32.totalorder %s109, %s110
      %p121 = scmp.eq.s32.totalorder %s17, 0
      %p122 = por %p120, %p121
      %p123 = scmp.ne.s32.totalorder %s109, %s110
      %p124 = scmp.eq.s32.totalorder %s18, 1
      %p125 = por %p123, %p124
      %p127 = scmp.ne.s32.totalorder %s110, %s126
      %p128 = scmp.eq.s32.totalorder %s18, 0
      %p129 = por %p127, %p128
      %p130 = scmp.le.s32.totalorder 1, %s12
      %p131 = scmp.lt.s32.totalorder %s12, 3
      %p132 = pnand %p130, %p131
      %p133 = pneg %p132
      // Predicated region
      $region9: #{flexi_input_patcher.4} parent=5 // pred_check
        _
      $region10: #{flexi_input_patcher.4} parent=5 // pred_check_branch
        %135 = sbr.rel (%p132) target = $region12
      $region11: #{flexi_input_patcher.4} parent=5 // pred_region
        %s136 = ssub.s32 %s12, 1
        // Predicated region
        $region13: #{flexi_input_patcher.4} parent=11 // pred_check
          %p137 = pneg %p73
        $region14: #{flexi_input_patcher.4} parent=11 // pred_check_branch
          %139 = sbr.rel (%p137) target = $region16
        $region15: #{flexi_input_patcher.4} parent=11 // pred_region
          _
        $region16: #{flexi_input_patcher.4} parent=11 // pred_fallthru
          _
        // Predicated region
        $region17: #{flexi_input_patcher.4} parent=11 // pred_check
          %p140 = pneg %p94
        $region18: #{flexi_input_patcher.4} parent=11 // pred_check_branch
          %142 = sbr.rel (%p140) target = $region20
        $region19: #{flexi_input_patcher.4} parent=11 // pred_region
          _
        $region20: #{flexi_input_patcher.4} parent=11 // pred_fallthru
          _
      $region12: #{flexi_input_patcher.4} parent=5 // pred_fallthru
        _
      %p143 = scmp.lt.s32.totalorder %s12, 2
      // Predicated region
      $region21: #{flexi_input_patcher.4} parent=5 // pred_check
        %p144 = pneg %p143
      $region22: #{flexi_input_patcher.4} parent=5 // pred_check_branch
        %146 = sbr.rel (%p144) target = $region24
      $region23: #{flexi_input_patcher.4} parent=5 // pred_region
        // Predicated region
        $region25: #{flexi_input_patcher.4} parent=23 // pred_check
          %p147 = pneg %p46
        $region26: #{flexi_input_patcher.4} parent=23 // pred_check_branch
          %149 = sbr.rel (%p147) target = $region28
        $region27: #{flexi_input_patcher.4} parent=23 // pred_region
          %s150 = smul.u32 8, %s20
          %p151 = scmp.lt.s32.totalorder %s19, 1
          %s152 = scalar_select %p151, %s19, 1
          %p153 = scmp.lt.s32.totalorder %s150, 7
          %s154 = scalar_select %p153, %s150, 7
          %s155 = smul.addr %s152, 8
          %s156 = sadd.s32 %s154, %s155
          %s157 = smul.addr %s156, 2
          %s158 = scalar_lea.vmem %s0, %s157
          %s159 = smul.u32 8, %s20
        $region28: #{flexi_input_patcher.4} parent=23 // pred_fallthru
          _
      $region24: #{flexi_input_patcher.4} parent=5 // pred_fallthru
        _
      %p160 = scmp.le.s32.totalorder 1, %s12
      %p161 = scmp.lt.s32.totalorder %s12, 3
      %p162 = pnand %p160, %p161
      %p163 = pneg %p162
      // Predicated region
      $region29: #{flexi_input_patcher.4} parent=5 // pred_check
        _
      $region30: #{flexi_input_patcher.4} parent=5 // pred_check_branch
        %165 = sbr.rel (%p162) target = $region32
      $region31: #{flexi_input_patcher.4} parent=5 // pred_region
        %s166 = ssub.s32 %s12, 1
        %s167 = smul.u32 8, %s22
        %p168 = scmp.lt.s32.totalorder %s21, 1
        %s169 = scalar_select %p168, %s21, 1
        %p170 = scmp.lt.s32.totalorder %s167, 7
        %s171 = scalar_select %p170, %s167, 7
        %s172 = smul.addr %s169, 8
        %s173 = sadd.s32 %s171, %s172
        %s174 = smul.addr %s173, 2
        %s175 = scalar_lea.vmem %s0, %s174
        %p176 = pneg %p52
        %p177 = pneg %p49
        %p178 = pneg %p73
        %p179 = pneg %p70
        %p180 = pneg %p94
        %p181 = pneg %p91
        %p182 = pneg %p122
        %p183 = pneg %p119
        %s184 = sand.u32 %s109, 1
        %s185 = scalar_lea.sflag [#allocation3], %s184
        %s186 = sand.u32 %s109, 1
        %s187 = smul.addr %s186, 2
        %s188 = scalar_lea.vmem [#allocation2], %s187
        %s189 = smul.u32 8, %s22
        %p190 = scmp.lt.s32.totalorder %s21, 1
        %s191 = scalar_select %p190, %s21, 1
        %p192 = scmp.lt.s32.totalorder %s189, 7
        %s193 = scalar_select %p192, %s189, 7
        %s194 = smul.addr %s191, 8
        %s195 = sadd.s32 %s193, %s194
        %s196 = smul.addr %s195, 2
        %s197 = scalar_lea.vmem %s0, %s196
        %s198 = smul.u32 8, %s22
        %s199 = smul.u32 2, %s22
        %v201 = vld [vmem:[%s2] sm:$0x1]
        %v202 = vld [vmem:[%s2 + $0x1] sm:$0x1]
        %v203 = vld [vmem:[%s2 + $0x2] sm:$0x1]
        %v204 = vld [vmem:[%s2 + $0x3] sm:$0x1]
        %v205 = vld [vmem:[%s2 + $0x4] sm:$0x1]
        loop: start=0, step=1, limit=2
        $region33: #{flexi_input_patcher.4} parent=31 // loop_pre_header
          _
        $region34: #{flexi_input_patcher.4} parent=31 // loop_header
          %s207 = sphi 0, %s211
          %p208 = scmp.ge.s32.totalorder %s207, 2
        $region35: #{flexi_input_patcher.4} parent=31 // loop_header_branch
          %210 = sbr.rel (%p208) target = $region39
        $region36: #{flexi_input_patcher.4} parent=31 // loop_body
          %s212 = smul.u32 %s207, 4
          %s213 = smul.u32 %s212, 2
          %s214 = scalar_lea.vmem %s197, %s213
          %v215 = vld [vmem:[%s214] sm:$0x3]
          %v216 = vpack.c.bf16 %v215, %v215
          %v217 = vld [vmem:[%s1] sm:$0xf]
          %v218 = vld [vmem:[%s1 + $0x4] sm:$0x3]
          %s219 = sadd.s32 %s212, 1
          %s220 = smul.u32 %s219, 2
          %s221 = scalar_lea.vmem %s197, %s220
          %v222 = vld [vmem:[%s221] sm:$0x3]
          %v223 = vpack.c.bf16 %v222, %v222
          %s224 = scalar_lea.vmem %s1, 8
          %v225 = vld [vmem:[%s224] sm:$0xf]
          %v226 = vld [vmem:[%s224 + $0x4] sm:$0x3]
          %v229 = vunpack.c.l.b16 %v225
          %v230 = vunpack.c.l.b16 %v226
          %v231 = vpack.c.b16 %v230, %v229
          %vm232 = vcmask 97280
          %v234 = vsel %vm232, %v223, 0
          %vm236 = vcmask 1045504
          %v238 = vsel %vm236, %v231, 0
          %240 = vmatprep.subr.bf16.mxu0 0
          %241 = vmatpush1.bf16.msra.mxu0 %v238
          %242 = vmatprep.subr.bf16.mxu0 0
          %243 = vmatpush1.bf16.msra.mxu0 0
          %244 = vmatprep.subr.bf16.mxu0 0
          %245 = vmatpush1.bf16.msra.mxu0 0
          %246 = vmatprep.subr.bf16.mxu0 0
          %247 = vmatpush1.bf16.msra.mxu0 0
          %248 = vmatprep.subr.bf16.mxu0 0
          %249 = vmatpush1.bf16.msra.mxu0 0
          %250 = vmatprep.subr.bf16.mxu0 0
          %251 = vmatpush1.bf16.msra.mxu0 0
          %252 = vmatprep.subr.bf16.mxu0 0
          %253 = vmatpush1.bf16.msra.mxu0 0
          %254 = vmatprep.subr.bf16.mxu0 0
          %255 = vmatpush1.bf16.msra.mxu0 0
          %256 = vmatprep.subr.bf16.mxu0 0
          %257 = vmatpush1.bf16.msra.mxu0 0
          %258 = vmatprep.subr.bf16.mxu0 0
          %259 = vmatpush1.bf16.msra.mxu0 0
          %260 = vmatprep.subr.bf16.mxu0 0
          %261 = vmatpush1.bf16.msra.mxu0 0
          %262 = vmatprep.subr.bf16.mxu0 0
          %263 = vmatpush1.bf16.msra.mxu0 0
          %264 = vmatprep.subr.bf16.mxu0 0
          %265 = vmatpush1.bf16.msra.mxu0 0
          %266 = vmatprep.subr.bf16.mxu0 0
          %267 = vmatpush1.bf16.msra.mxu0 0
          %268 = vmatprep.subr.bf16.mxu0 0
          %269 = vmatpush1.bf16.msra.mxu0 0
          %270 = vmatprep.subr.bf16.mxu0 0
          %271 = vmatpush1.bf16.msra.mxu0 0
          %272 = vmatprep.mubr.bf16.mxu0 0
          %273 = vmatmul.mubr.bf16.gmra.mrb[0].mxu0 %v234
          %v274 = vpop.f32.mrb[0].mxu0
          %v275 = vadd.f32 0.0, %v274
          %v276 = vpop.f32.mrb[0].mxu0
          %v277 = vpop.f32.mrb[0].mxu0
          %v278 = vpop.f32.mrb[0].mxu0
          %279 = vdwg.mxu0
          %v282 = vunpack.c.l.b16 %v217
          %v283 = vunpack.c.l.b16 %v218
          %v284 = vpack.c.b16 %v283, %v282
          %v286 = vsel %vm232, %v216, 0
          %v289 = vsel %vm236, %v284, 0
          %291 = vmatprep.subr.bf16.mxu0 0
          %292 = vmatpush1.bf16.msra.mxu0 %v289
          %293 = vmatprep.subr.bf16.mxu0 0
          %294 = vmatpush1.bf16.msra.mxu0 0
          %295 = vmatprep.subr.bf16.mxu0 0
          %296 = vmatpush1.bf16.msra.mxu0 0
          %297 = vmatprep.subr.bf16.mxu0 0
          %298 = vmatpush1.bf16.msra.mxu0 0
          %299 = vmatprep.subr.bf16.mxu0 0
          %300 = vmatpush1.bf16.msra.mxu0 0
          %301 = vmatprep.subr.bf16.mxu0 0
          %302 = vmatpush1.bf16.msra.mxu0 0
          %303 = vmatprep.subr.bf16.mxu0 0
          %304 = vmatpush1.bf16.msra.mxu0 0
          %305 = vmatprep.subr.bf16.mxu0 0
          %306 = vmatpush1.bf16.msra.mxu0 0
          %307 = vmatprep.subr.bf16.mxu0 0
          %308 = vmatpush1.bf16.msra.mxu0 0
          %309 = vmatprep.subr.bf16.mxu0 0
          %310 = vmatpush1.bf16.msra.mxu0 0
          %311 = vmatprep.subr.bf16.mxu0 0
          %312 = vmatpush1.bf16.msra.mxu0 0
          %313 = vmatprep.subr.bf16.mxu0 0
          %314 = vmatpush1.bf16.msra.mxu0 0
          %315 = vmatprep.subr.bf16.mxu0 0
          %316 = vmatpush1.bf16.msra.mxu0 0
          %317 = vmatprep.subr.bf16.mxu0 0
          %318 = vmatpush1.bf16.msra.mxu0 0
          %319 = vmatprep.subr.bf16.mxu0 0
          %320 = vmatpush1.bf16.msra.mxu0 0
          %321 = vmatprep.subr.bf16.mxu0 0
          %322 = vmatpush1.bf16.msra.mxu0 0
          %323 = vmatprep.mubr.bf16.mxu0 0
          %324 = vmatmul.mubr.bf16.gmra.mrb[0].mxu0 %v286
          %v325 = vpop.f32.mrb[0].mxu0
          %v326 = vadd.f32 %v275, %v325
          %v327 = vpop.f32.mrb[0].mxu0
          %v328 = vpop.f32.mrb[0].mxu0
          %v329 = vpop.f32.mrb[0].mxu0
          %330 = vdwg.mxu0
          %s331 = sadd.s32 %s212, 2
          %s332 = smul.u32 %s331, 2
          %s333 = scalar_lea.vmem %s197, %s332
          %v334 = vld [vmem:[%s333] sm:$0x3]
          %v335 = vpack.c.bf16 %v334, %v334
          %s336 = scalar_lea.vmem %s1, 16
          %v337 = vld [vmem:[%s336] sm:$0xf]
          %v338 = vld [vmem:[%s336 + $0x4] sm:$0x3]
          %v341 = vunpack.c.l.b16 %v337
          %v342 = vunpack.c.l.b16 %v338
          %v343 = vpack.c.b16 %v342, %v341
          %v345 = vsel %vm232, %v335, 0
          %v348 = vsel %vm236, %v343, 0
          %350 = vmatprep.subr.bf16.mxu0 0
          %351 = vmatpush1.bf16.msra.mxu0 %v348
          %352 = vmatprep.subr.bf16.mxu0 0
          %353 = vmatpush1.bf16.msra.mxu0 0
          %354 = vmatprep.subr.bf16.mxu0 0
          %355 = vmatpush1.bf16.msra.mxu0 0
          %356 = vmatprep.subr.bf16.mxu0 0
          %357 = vmatpush1.bf16.msra.mxu0 0
          %358 = vmatprep.subr.bf16.mxu0 0
          %359 = vmatpush1.bf16.msra.mxu0 0
          %360 = vmatprep.subr.bf16.mxu0 0
          %361 = vmatpush1.bf16.msra.mxu0 0
          %362 = vmatprep.subr.bf16.mxu0 0
          %363 = vmatpush1.bf16.msra.mxu0 0
          %364 = vmatprep.subr.bf16.mxu0 0
          %365 = vmatpush1.bf16.msra.mxu0 0
          %366 = vmatprep.subr.bf16.mxu0 0
          %367 = vmatpush1.bf16.msra.mxu0 0
          %368 = vmatprep.subr.bf16.mxu0 0
          %369 = vmatpush1.bf16.msra.mxu0 0
          %370 = vmatprep.subr.bf16.mxu0 0
          %371 = vmatpush1.bf16.msra.mxu0 0
          %372 = vmatprep.subr.bf16.mxu0 0
          %373 = vmatpush1.bf16.msra.mxu0 0
          %374 = vmatprep.subr.bf16.mxu0 0
          %375 = vmatpush1.bf16.msra.mxu0 0
          %376 = vmatprep.subr.bf16.mxu0 0
          %377 = vmatpush1.bf16.msra.mxu0 0
          %378 = vmatprep.subr.bf16.mxu0 0
          %379 = vmatpush1.bf16.msra.mxu0 0
          %380 = vmatprep.subr.bf16.mxu0 0
          %381 = vmatpush1.bf16.msra.mxu0 0
          %382 = vmatprep.mubr.bf16.mxu0 0
          %383 = vmatmul.mubr.bf16.gmra.mrb[0].mxu0 %v345
          %v384 = vpop.f32.mrb[0].mxu0
          %v385 = vadd.f32 0.0, %v384
          %v386 = vpop.f32.mrb[0].mxu0
          %v387 = vpop.f32.mrb[0].mxu0
          %v388 = vpop.f32.mrb[0].mxu0
          %389 = vdwg.mxu0
          %v390 = vadd.f32 %v326, %v385
          %s391 = sadd.s32 %s212, 3
          %s392 = smul.u32 %s391, 2
          %s393 = scalar_lea.vmem %s197, %s392
          %v394 = vld [vmem:[%s393] sm:$0x3]
          %v395 = vpack.c.bf16 %v394, %v394
          %s396 = scalar_lea.vmem %s1, 24
          %v397 = vld [vmem:[%s396] sm:$0xf]
          %v398 = vld [vmem:[%s396 + $0x4] sm:$0x3]
          %v401 = vunpack.c.l.b16 %v397
          %v402 = vunpack.c.l.b16 %v398
          %v403 = vpack.c.b16 %v402, %v401
          %v405 = vsel %vm232, %v395, 0
          %v408 = vsel %vm236, %v403, 0
          %410 = vmatprep.subr.bf16.mxu0 0
          %411 = vmatpush1.bf16.msra.mxu0 %v408
          %412 = vmatprep.subr.bf16.mxu0 0
          %413 = vmatpush1.bf16.msra.mxu0 0
          %414 = vmatprep.subr.bf16.mxu0 0
          %415 = vmatpush1.bf16.msra.mxu0 0
          %416 = vmatprep.subr.bf16.mxu0 0
          %417 = vmatpush1.bf16.msra.mxu0 0
          %418 = vmatprep.subr.bf16.mxu0 0
          %419 = vmatpush1.bf16.msra.mxu0 0
          %420 = vmatprep.subr.bf16.mxu0 0
          %421 = vmatpush1.bf16.msra.mxu0 0
          %422 = vmatprep.subr.bf16.mxu0 0
          %423 = vmatpush1.bf16.msra.mxu0 0
          %424 = vmatprep.subr.bf16.mxu0 0
          %425 = vmatpush1.bf16.msra.mxu0 0
          %426 = vmatprep.subr.bf16.mxu0 0
          %427 = vmatpush1.bf16.msra.mxu0 0
          %428 = vmatprep.subr.bf16.mxu0 0
          %429 = vmatpush1.bf16.msra.mxu0 0
          %430 = vmatprep.subr.bf16.mxu0 0
          %431 = vmatpush1.bf16.msra.mxu0 0
          %432 = vmatprep.subr.bf16.mxu0 0
          %433 = vmatpush1.bf16.msra.mxu0 0
          %434 = vmatprep.subr.bf16.mxu0 0
          %435 = vmatpush1.bf16.msra.mxu0 0
          %436 = vmatprep.subr.bf16.mxu0 0
          %437 = vmatpush1.bf16.msra.mxu0 0
          %438 = vmatprep.subr.bf16.mxu0 0
          %439 = vmatpush1.bf16.msra.mxu0 0
          %440 = vmatprep.subr.bf16.mxu0 0
          %441 = vmatpush1.bf16.msra.mxu0 0
          %442 = vmatprep.mubr.bf16.mxu0 0
          %443 = vmatmul.mubr.bf16.gmra.mrb[0].mxu0 %v405
          %v444 = vpop.f32.mrb[0].mxu0
          %v445 = vadd.f32 0.0, %v444
          %v446 = vpop.f32.mrb[0].mxu0
          %v447 = vpop.f32.mrb[0].mxu0
          %v448 = vpop.f32.mrb[0].mxu0
          %449 = vdwg.mxu0
          %v450 = vadd.f32 %v390, %v445
          %v451 = vlaneseq
          %v452 = vshrl.u32 %v451, 7
          %v453 = vsub.s32 0, %v452
          %v454 = vrot.slane %v201, %v453
          %v455 = vadd.f32 %v450, %v454
          %vm456 = vcmask 254976
          %v457 = vsel %vm456, %v455, 0.0
          %458 = vadd.xlane.f32.xlu0 %v457
          %v459 = vpop.xlane.xlu0 %458
          %v460 = vmul.f32 %v459, 0.03125
          %v461 = vsub.f32 %v455, %v460
          %v462 = vmul.f32 %v461, %v461
          %v463 = vsel %vm456, %v462, 0.0
          %464 = vadd.xlane.f32.xlu0 %v463
          %v465 = vpop.xlane.xlu0 %464
          %v466 = vmul.f32 %v465, 0.03125
          %v467 = vadd.f32 %v466, 1e-05
          %v468 = vrsqrt.pop %v467
          %v469 = vmul.f32 %v461, %v468
          %v470 = vlaneseq
          %v471 = vshrl.u32 %v470, 7
          %v472 = vsub.s32 0, %v471
          %v473 = vrot.slane %v202, %v472
          %v474 = vmul.f32 %v469, %v473
          %v475 = vlaneseq
          %v476 = vshrl.u32 %v475, 7
          %v477 = vsub.s32 0, %v476
          %v478 = vrot.slane %v203, %v477
          %v479 = vadd.f32 %v474, %v478
          %v480 = vsel %vm456, %v479, 0.0
          %481 = vadd.xlane.f32.xlu0 %v480
          %v482 = vpop.xlane.xlu0 %481
          %v483 = vmul.f32 %v482, 0.03125
          %v484 = vsub.f32 %v479, %v483
          %v485 = vmul.f32 %v484, %v484
          %v486 = vsel %vm456, %v485, 0.0
          %487 = vadd.xlane.f32.xlu0 %v486
          %v488 = vpop.xlane.xlu0 %487
          %v489 = vmul.f32 %v488, 0.03125
          %v490 = vadd.f32 %v489, 1e-05
          %v491 = vrsqrt.pop %v490
          %v492 = vmul.f32 %v484, %v491
          %v493 = vlaneseq
          %v494 = vshrl.u32 %v493, 7
          %v495 = vsub.s32 0, %v494
          %v496 = vrot.slane %v204, %v495
          %v497 = vmul.f32 %v492, %v496
          %v498 = vlaneseq
          %v499 = vshrl.u32 %v498, 7
          %v500 = vsub.s32 0, %v499
          %v501 = vrot.slane %v205, %v500
          %v502 = vadd.f32 %v497, %v501
          %v503 = vpack.c.bf16 %v502, %v502
          %s504 = scalar_lea.vmem %s188, %s207 [#allocation2]
          %vm505 = vcmask 253952
          %506 = vst.msk [vmem:[%s504] sm:$0x1] %vm505, %v503
        $region37: #{flexi_input_patcher.4} parent=31 // loop_footer
          %s211 = sadd.s32 1, %s207
        $region38: #{flexi_input_patcher.4} parent=31 // loop_footer_branch
          %206 = sbr.rel target = $region34
        $region39: #{flexi_input_patcher.4} parent=31 // loop_exit
          _
        %s507 = sand.u32 %s109, 1
        %s508 = scalar_lea.sflag [#allocation3], %s507
        %s509 = sand.u32 %s109, 1
        %s510 = smul.addr %s509, 2
        %s511 = scalar_lea.vmem [#allocation2], %s510
        // Predicated region
        $region40: #{flexi_input_patcher.4} parent=31 // pred_check
          %p512 = pneg %p119
        $region41: #{flexi_input_patcher.4} parent=31 // pred_check_branch
          %514 = sbr.rel (%p512) target = $region43
        $region42: #{flexi_input_patcher.4} parent=31 // pred_region
          %s515 = smul.u32 2, %s22
          %s517 = ssub.s32 32, 32
          %518 = vsyncadd %s508, %s517
          %s519 = smul.addr %s21, 2
          %s520 = sadd.s32 %s515, %s519
          %s521 = smul.addr %s520, 16
          %s522 = scalar_lea.hbm %s3, %s521
          %s523 = sshll.u32 %s511, 4
          %s524 = int_to_ptr.vmem [resolvable:$true] %s523
          %529 = dma.vmem_to_hbm [thread:$0]  %s524, 32, %s522, %s508, 16, 16, 1
        $region43: #{flexi_input_patcher.4} parent=31 // pred_fallthru
          _
      $region32: #{flexi_input_patcher.4} parent=5 // pred_fallthru
        _
      %p530 = scmp.le.s32.totalorder 2, %s12
      // Predicated region
      $region44: #{flexi_input_patcher.4} parent=5 // pred_check
        %p531 = pneg %p530
      $region45: #{flexi_input_patcher.4} parent=5 // pred_check_branch
        %533 = sbr.rel (%p531) target = $region47
      $region46: #{flexi_input_patcher.4} parent=5 // pred_region
        %s534 = ssub.s32 %s12, 2
        // Predicated region
        $region48: #{flexi_input_patcher.4} parent=46 // pred_check
          %p535 = pneg %p125
        $region49: #{flexi_input_patcher.4} parent=46 // pred_check_branch
          %537 = sbr.rel (%p535) target = $region51
        $region50: #{flexi_input_patcher.4} parent=46 // pred_region
          %s538 = sand.u32 %s110, 1
          %s539 = scalar_lea.sflag [#allocation3], %s538
          %s540 = sand.u32 %s110, 1
          %s541 = smul.addr %s540, 2
          %s542 = scalar_lea.vmem [#allocation2], %s541
          %543 = dma.done %s539, 32
        $region51: #{flexi_input_patcher.4} parent=46 // pred_fallthru
          _
      $region47: #{flexi_input_patcher.4} parent=5 // pred_fallthru
        _
    $region6: #{flexi_input_patcher.4} parent=1 // loop_footer
      %s16 = sadd.s32 1, %s12
    $region7: #{flexi_input_patcher.4} parent=1 // loop_footer_branch
      %11 = sbr.rel target = $region3
    $region8: #{flexi_input_patcher.4} parent=1 // loop_exit
      _
    %544 = vsyncpa [#allocation3], 1
    %s545 = scalar_lea.sflag [#allocation3], 1
    %546 = vsyncpa %s545, 1

</llo_original>
